<compile_context>
chip_gen: v6e
topology: v6e:2x2x1
jax: 0.10.0
libtpu: 0.0.40
codegen_flags: <defaults>
</compile_context>

<pallas_src>
import jax
import jax.numpy as jnp
from jax import lax
from jax.experimental import pallas as pl
from jax.experimental.pallas import tpu as pltpu


def _tensorcores_per_chip():
    """2 on v7x (two TensorCores per chip), else 1.  Safe fallback: 1."""
    try:
        kind = jax.devices()[0].device_kind.lower()
    except Exception:
        return 1
    return 2 if ("v7" in kind or "tpu7" in kind) else 1


def _choose_tiling(b, n, two_cores):
    """Pick (tb, cb, n_chunks, b_pad).

    cb: batches per inner softmax chunk (caps vreg live set at ~64 rows).
    tb: batches per grid step.  MXU M tile = tb*n: 256 rows on single-TC chips
        (grid=1, one fixed ~0.35us step), 128 rows on v7x so the grid has >=2
        parallel steps and both TensorCores get work.
    """
    # Sub-chunk: ~64 rows, sublane (8) aligned.
    cb = max(1, 64 // n)
    while cb > 1 and (cb * n) % 8 != 0:
        cb -= 1

    m_target = 128 if two_cores else 256
    tb = cb * max(1, m_target // (cb * n))
    # Don't pad the batch further than one tile.
    tb = min(tb, ((b + cb - 1) // cb) * cb)
    b_pad = ((b + tb - 1) // tb) * tb

    if (cb * n) % 8 != 0:
        # n itself is not sublane-aligned: fall back to a single full-array block
        # (block shape == full array dims satisfies the (8,128) constraint).
        # TODO(synk): pad n to a multiple of 8 instead for large unaligned seq lens.
        tb = b_pad = b
        cb = tb
    n_chunks = tb // cb
    return tb, cb, n_chunks, b_pad


def _make_kernel(n, cb, d, d_pad, n_chunks, use_mask):
    rows_c = cb * n  # rows per inner chunk

    def kernel(x_ref, wqkv_ref, wr_ref, alpha_ref, beta_ref, mask_ref,
               out_ref, qkv_ref):
        # ---- Phase 1: one fused bf16 MXU pass for Q, K, V, staged to VMEM scratch.
        qkv_ref[...] = jnp.dot(x_ref[...], wqkv_ref[...],
                               preferred_element_type=jnp.float32)

        # Tiny operands hoisted out of the chunk loop (no per-iter broadcasts).
        alpha = alpha_ref[...].reshape(1, 1, d_pad)     # scale already folded in
        beta = beta_ref[...].reshape(1, 1, d_pad)
        wr = wr_ref[...]                                # (d_pad, d) bf16
        if use_mask:
            neg_pad = mask_ref[...].reshape(1, 1, d_pad)  # 0 / -1e30

        def masked_softmax(z):
            if use_mask:
                z = z + neg_pad                          # kill padded lanes
            m = jnp.max(z, axis=-1, keepdims=True)
            e = jnp.exp(z - m)
            s = jnp.sum(e, axis=-1, keepdims=True)
            return e * pl.reciprocal(s, approx=True)     # EUP, not VALU divide

        # ---- Phase 2: softmax / weighted sums / residual over small chunks so the
        # vreg live set stays bounded (reads slices from the scratch Ref).
        def chunk_body(c, carry):
            r0 = pl.multiple_of(c * rows_c, 8)
            q2d = qkv_ref[pl.ds(r0, rows_c), pl.ds(0 * d_pad, d_pad)]
            k2d = qkv_ref[pl.ds(r0, rows_c), pl.ds(1 * d_pad, d_pad)]
            v2d = qkv_ref[pl.ds(r0, rows_c), pl.ds(2 * d_pad, d_pad)]
            q = q2d.reshape(cb, n, d_pad)
            k = k2d.reshape(cb, n, d_pad)
            v = v2d.reshape(cb, n, d_pad)

            # softmax over the feature axis (matches torch.softmax(..., dim=-1))
            alpha_w = masked_softmax(q * alpha)
            global_query = jnp.sum(q * alpha_w, axis=1, keepdims=True)  # (cb,1,d_pad)

            p = global_query * k                                        # bcast over n
            beta_w = masked_softmax(p * beta)
            global_key = jnp.sum(p * beta_w, axis=1, keepdims=True)     # (cb,1,d_pad)

            kvi = (global_key * v).reshape(rows_c, d_pad)
            out = jnp.dot(kvi.astype(wr.dtype), wr,
                          preferred_element_type=jnp.float32)           # (rows_c, d)
            out = out + q2d[:, :d]                                      # residual +q
            out_ref[pl.ds(r0, rows_c), :] = out.astype(out_ref.dtype)
            return carry

        lax.fori_loop(0, n_chunks, chunk_body, 0, unroll=True)

    return kernel


def fastformer_attention(x, wq, wk, wv, wr, alpha, beta):
    """x: (b, n, dim); wq/wk/wv: (dim, d); wr: (d, d); alpha/beta: (d,)."""
    b, n, dim = x.shape
    d = wq.shape[1]
    scale = d ** (-0.5)
    d_pad = ((d + 127) // 128) * 128          # lane-aligned feature slices for q/k/v
    f32, bf16 = jnp.float32, jnp.bfloat16

    two_cores = _tensorcores_per_chip() >= 2
    tb, cb, n_chunks, b_pad = _choose_tiling(b, n, two_cores)
    rows = tb * n

    # Fused, lane-padded QKV weight (bf16 for the MXU; f32 accumulation in-kernel).
    wqkv = jnp.zeros((dim, 3 * d_pad), f32)
    wqkv = wqkv.at[:, 0 * d_pad:0 * d_pad + d].set(wq.astype(f32))
    wqkv = wqkv.at[:, 1 * d_pad:1 * d_pad + d].set(wk.astype(f32))
    wqkv = wqkv.at[:, 2 * d_pad:2 * d_pad + d].set(wv.astype(f32))
    wqkv = wqkv.astype(bf16)
    # Wr padded only on the contraction dim; output stays d lanes wide.
    wr_p = jnp.zeros((d_pad, d), f32).at[:d, :].set(wr.astype(f32)).astype(bf16)

    # Fold scale_factor into the (tiny) alpha/beta parameters once, host-side.
    alpha_p = jnp.zeros((1, d_pad), f32).at[0, :d].set(alpha.astype(f32) * scale)
    beta_p = jnp.zeros((1, d_pad), f32).at[0, :d].set(beta.astype(f32) * scale)
    # Host-prepared additive softmax mask for padded lanes (0 valid / -1e30 pad).
    lane = jnp.arange(d_pad)
    neg_mask = jnp.where(lane < d, 0.0, -1e30).astype(f32).reshape(1, d_pad)

    if b_pad != b:
        x = jnp.pad(x, ((0, b_pad - b), (0, 0), (0, 0)))
    x2d = x.reshape(b_pad * n, dim).astype(bf16)   # straight 2-D MXU LHS, bf16

    cost = pl.CostEstimate(
        flops=int(2 * b_pad * n * dim * 3 * d_pad        # fused qkv matmul
                  + 2 * b_pad * n * d_pad * d            # wr matmul
                  + 12 * b_pad * n * d_pad),             # elementwise / softmax
        transcendentals=int(2 * b_pad * n * d_pad),      # two exps per element
        bytes_accessed=int(x2d.size * 2 + wqkv.size * 2 + wr_p.size * 2
                           + 3 * d_pad * 4 + b_pad * n * d * 4),
    )

    out = pl.pallas_call(
        _make_kernel(n=n, cb=cb, d=d, d_pad=d_pad, n_chunks=n_chunks,
                     use_mask=(d != d_pad)),
        out_shape=jax.ShapeDtypeStruct((b_pad * n, d), f32),
        grid_spec=pltpu.PrefetchScalarGridSpec(
            num_scalar_prefetch=0,
            grid=(b_pad // tb,),
            in_specs=[
                pl.BlockSpec((rows, dim), lambda i: (i, 0)),        # x (bf16)
                pl.BlockSpec((dim, 3 * d_pad), lambda i: (0, 0)),   # fused Wqkv (bf16)
                pl.BlockSpec((d_pad, d), lambda i: (0, 0)),         # Wr (bf16)
                pl.BlockSpec((1, d_pad), lambda i: (0, 0)),         # alpha * scale
                pl.BlockSpec((1, d_pad), lambda i: (0, 0)),         # beta * scale
                pl.BlockSpec((1, d_pad), lambda i: (0, 0)),         # pad mask
            ],
            out_specs=pl.BlockSpec((rows, d), lambda i: (i, 0)),    # only d lanes out
            scratch_shapes=[pltpu.VMEM((rows, 3 * d_pad), f32)],    # staged qkv
        ),
        compiler_params=pltpu.CompilerParams(dimension_semantics=("parallel",)),
        cost_estimate=cost,
    )(x2d, wqkv, wr_p, alpha_p, beta_p, neg_mask)

    out = out.reshape(b_pad, n, d)
    return out[:b] if b_pad != b else out


def fastformer_reference(x, wq, wk, wv, wr, alpha, beta):
    d = wq.shape[1]
    scale = d ** (-0.5)
    q = jnp.einsum("bnc,cd->bnd", x, wq)
    k = jnp.einsum("bnc,cd->bnd", x, wk)
    v = jnp.einsum("bnc,cd->bnd", x, wv)
    alpha_w = jax.nn.softmax(q * alpha * scale, axis=-1)
    gq = jnp.sum(q * alpha_w, axis=1)                      # (b, d)
    p = gq[:, None, :] * k
    beta_w = jax.nn.softmax(p * beta * scale, axis=-1)
    gk = jnp.sum(p * beta_w, axis=1)                       # (b, d)
    kvi = gk[:, None, :] * v
    return jnp.einsum("bnd,de->bne", kvi, wr) + q


if __name__ == "__main__":
    # Module config: dim (input features), decode_dim (attention width).
    # batch=32, seq=8 -> single-TC chips: tb=32 / grid=(1,); v7x: tb=16 / grid=(2,).
    batch, seq, dim, decode_dim = 32, 8, 32, 16

    key = jax.random.PRNGKey(0)
    kx, kq, kk, kv, kr, ka, kb = jax.random.split(key, 7)

    x = jax.random.normal(kx, (batch, seq, dim), dtype=jnp.float32)

    # Deterministic parameter init (nn.Linear-like scaling), pre-transposed to (in, out).
    def linear_w(k, fan_in, fan_out):
        bound = 1.0 / (fan_in ** 0.5)
        return jax.random.uniform(k, (fan_in, fan_out), jnp.float32, -bound, bound)

    wq = linear_w(kq, dim, decode_dim)
    wk = linear_w(kk, dim, decode_dim)
    wv = linear_w(kv, dim, decode_dim)
    wr = linear_w(kr, decode_dim, decode_dim)
    weight_alpha = jax.random.normal(ka, (decode_dim,), jnp.float32)
    weight_beta = jax.random.normal(kb, (decode_dim,), jnp.float32)
    # NOTE: self.to_qkv is defined in __init__ but unused in forward(); omitted here.

    out = fastformer_attention(x, wq, wk, wv, wr, weight_alpha, weight_beta)
    out = jax.block_until_ready(out)

    ref = fastformer_reference(x, wq, wk, wv, wr, weight_alpha, weight_beta)
    assert out.shape == (batch, seq, decode_dim)
    # Tolerance accounts for bf16 MXU inputs (x/Wqkv/Wr), the approx EUP reciprocal in
    # the softmax denominator, and the host-side folding of scale into alpha/beta.
    # Real bugs (wrong softmax/reduction) produce O(0.1-1) errors, still well outside.
    assert jnp.allclose(out, ref, atol=3e-2, rtol=3e-2), "mismatch vs. reference"

    print("KERNEL_OK")
</pallas_src>

<mosaic_0001>
module attributes {stable_mosaic.version = 11 : i64} {
  func.func @kernel(%arg0: i32, %arg1: memref<256x32xbf16, #tpu.memory_space<vmem>>, %arg2: memref<32x384xbf16, #tpu.memory_space<vmem>>, %arg3: memref<128x16xbf16, #tpu.memory_space<vmem>>, %arg4: memref<1x128xf32, #tpu.memory_space<vmem>>, %arg5: memref<1x128xf32, #tpu.memory_space<vmem>>, %arg6: memref<1x128xf32, #tpu.memory_space<vmem>>, %arg7: memref<256x16xf32, #tpu.memory_space<vmem>>, %arg8: memref<256x384xf32, #tpu.memory_space<vmem>>) attributes {dimension_semantics = [#tpu.dimension_semantics<parallel>], iteration_bounds = array<i64: 1>, scalar_prefetch = 0 : i64, scratch_operands = 1 : i64, tpu.core_type = #tpu.core_type<tc>, window_params = [{transform_indices = @transform_0, window_bounds = array<i64: 256, 32>}, {pipeline_mode = #tpu.pipeline_mode<synchronous>, transform_indices = @transform_1, window_bounds = array<i64: 32, 384>}, {pipeline_mode = #tpu.pipeline_mode<synchronous>, transform_indices = @transform_2, window_bounds = array<i64: 128, 16>}, {pipeline_mode = #tpu.pipeline_mode<synchronous>, transform_indices = @transform_3, window_bounds = array<i64: 1, 128>}, {pipeline_mode = #tpu.pipeline_mode<synchronous>, transform_indices = @transform_4, window_bounds = array<i64: 1, 128>}, {pipeline_mode = #tpu.pipeline_mode<synchronous>, transform_indices = @transform_5, window_bounds = array<i64: 1, 128>}, {transform_indices = @transform_6, window_bounds = array<i64: 256, 16>}]} {
    %c0 = arith.constant 0 : index
    %c0_0 = arith.constant 0 : index
    %0 = vector.load %arg1[%c0, %c0_0] : memref<256x32xbf16, #tpu.memory_space<vmem>>, vector<256x32xbf16>
    %c0_1 = arith.constant 0 : index
    %c0_2 = arith.constant 0 : index
    %1 = vector.load %arg2[%c0_1, %c0_2] : memref<32x384xbf16, #tpu.memory_space<vmem>>, vector<32x384xbf16>
    %cst = arith.constant dense<0.000000e+00> : vector<256x384xf32>
    %2 = tpu.matmul %0, %1, %cst {dimension_numbers = #tpu.dot_dimension_numbers<[1], [0], [0], [1], [0, 0, 1, 1], [], []>} : vector<256x32xbf16>, vector<32x384xbf16>, vector<256x384xf32> -> vector<256x384xf32>
    %c0_3 = arith.constant 0 : index
    %c0_4 = arith.constant 0 : index
    %3 = vector.load %arg8[%c0_3, %c0_4] : memref<256x384xf32, #tpu.memory_space<vmem>>, vector<256x384xf32>
    tpu.vector_store %arg8[%c0_3, %c0_4], %2 {strides = array<i32>} : memref<256x384xf32, #tpu.memory_space<vmem>>, vector<256x384xf32>,
    %c0_5 = arith.constant 0 : index
    %c0_6 = arith.constant 0 : index
    %4 = vector.load %arg4[%c0_5, %c0_6] : memref<1x128xf32, #tpu.memory_space<vmem>>, vector<1x128xf32>
    %5 = vector.shape_cast %4 : vector<1x128xf32> to vector<1x1x128xf32>
    %c0_7 = arith.constant 0 : index
    %c0_8 = arith.constant 0 : index
    %6 = vector.load %arg5[%c0_7, %c0_8] : memref<1x128xf32, #tpu.memory_space<vmem>>, vector<1x128xf32>
    %7 = vector.shape_cast %6 : vector<1x128xf32> to vector<1x1x128xf32>
    %c0_9 = arith.constant 0 : index
    %c0_10 = arith.constant 0 : index
    %8 = vector.load %arg3[%c0_9, %c0_10] : memref<128x16xbf16, #tpu.memory_space<vmem>>, vector<128x16xbf16>
    %c0_11 = arith.constant 0 : index
    %c0_12 = arith.constant 0 : index
    %9 = vector.load %arg6[%c0_11, %c0_12] : memref<1x128xf32, #tpu.memory_space<vmem>>, vector<1x128xf32>
    %10 = vector.shape_cast %9 : vector<1x128xf32> to vector<1x1x128xf32>
    %c0_i32 = arith.constant 0 : i32
    %c64_i32 = arith.constant 64 : i32
    %11 = arith.muli %c0_i32, %c64_i32 : i32
    %12 = tpu.assume_multiple %11, 8 : i32
    %13 = arith.index_cast %12 : i32 to index
    %c0_13 = arith.constant 0 : index
    %14 = vector.load %arg8[%13, %c0_13] : memref<256x384xf32, #tpu.memory_space<vmem>>, vector<64x128xf32>
    %15 = arith.index_cast %12 : i32 to index
    %c128 = arith.constant 128 : index
    %16 = vector.load %arg8[%15, %c128] : memref<256x384xf32, #tpu.memory_space<vmem>>, vector<64x128xf32>
    %17 = arith.index_cast %12 : i32 to index
    %c256 = arith.constant 256 : index
    %18 = vector.load %arg8[%17, %c256] : memref<256x384xf32, #tpu.memory_space<vmem>>, vector<64x128xf32>
    %19 = vector.shape_cast %14 : vector<64x128xf32> to vector<8x8x128xf32>
    %20 = vector.shape_cast %16 : vector<64x128xf32> to vector<8x8x128xf32>
    %21 = vector.shape_cast %18 : vector<64x128xf32> to vector<8x8x128xf32>
    %22 = vector.broadcast %5 : vector<1x1x128xf32> to vector<8x8x128xf32>
    %23 = arith.mulf %19, %22 : vector<8x8x128xf32>
    %24 = vector.broadcast %10 : vector<1x1x128xf32> to vector<8x8x128xf32>
    %25 = arith.addf %23, %24 : vector<8x8x128xf32>
    %cst_14 = arith.constant dense<0xFF800000> : vector<8x8xf32>
    %26 = vector.multi_reduction <maximumf>, %25, %cst_14 [2] : vector<8x8x128xf32> to vector<8x8xf32>
    %27 = vector.shape_cast %26 : vector<8x8xf32> to vector<8x8x1xf32>
    %28 = vector.broadcast %27 : vector<8x8x1xf32> to vector<8x8x128xf32>
    %29 = arith.subf %25, %28 : vector<8x8x128xf32>
    %30 = math.exp %29 : vector<8x8x128xf32>
    %cst_15 = arith.constant dense<0.000000e+00> : vector<8x8xf32>
    %31 = vector.multi_reduction <add>, %30, %cst_15 [2] : vector<8x8x128xf32> to vector<8x8xf32>
    %32 = vector.shape_cast %31 : vector<8x8xf32> to vector<8x8x1xf32>
    %33 = tpu.reciprocal %32 {approx = true} : vector<8x8x1xf32> -> vector<8x8x1xf32>
    %34 = vector.broadcast %33 : vector<8x8x1xf32> to vector<8x8x128xf32>
    %35 = arith.mulf %30, %34 : vector<8x8x128xf32>
    %36 = arith.mulf %19, %35 : vector<8x8x128xf32>
    %cst_16 = arith.constant dense<0.000000e+00> : vector<8x128xf32>
    %37 = vector.multi_reduction <add>, %36, %cst_16 [1] : vector<8x8x128xf32> to vector<8x128xf32>
    %38 = vector.shape_cast %37 : vector<8x128xf32> to vector<8x1x128xf32>
    %39 = vector.broadcast %38 : vector<8x1x128xf32> to vector<8x8x128xf32>
    %40 = arith.mulf %39, %20 : vector<8x8x128xf32>
    %41 = vector.broadcast %7 : vector<1x1x128xf32> to vector<8x8x128xf32>
    %42 = arith.mulf %40, %41 : vector<8x8x128xf32>
    %43 = vector.broadcast %10 : vector<1x1x128xf32> to vector<8x8x128xf32>
    %44 = arith.addf %42, %43 : vector<8x8x128xf32>
    %cst_17 = arith.constant dense<0xFF800000> : vector<8x8xf32>
    %45 = vector.multi_reduction <maximumf>, %44, %cst_17 [2] : vector<8x8x128xf32> to vector<8x8xf32>
    %46 = vector.shape_cast %45 : vector<8x8xf32> to vector<8x8x1xf32>
    %47 = vector.broadcast %46 : vector<8x8x1xf32> to vector<8x8x128xf32>
    %48 = arith.subf %44, %47 : vector<8x8x128xf32>
    %49 = math.exp %48 : vector<8x8x128xf32>
    %cst_18 = arith.constant dense<0.000000e+00> : vector<8x8xf32>
    %50 = vector.multi_reduction <add>, %49, %cst_18 [2] : vector<8x8x128xf32> to vector<8x8xf32>
    %51 = vector.shape_cast %50 : vector<8x8xf32> to vector<8x8x1xf32>
    %52 = tpu.reciprocal %51 {approx = true} : vector<8x8x1xf32> -> vector<8x8x1xf32>
    %53 = vector.broadcast %52 : vector<8x8x1xf32> to vector<8x8x128xf32>
    %54 = arith.mulf %49, %53 : vector<8x8x128xf32>
    %55 = arith.mulf %40, %54 : vector<8x8x128xf32>
    %cst_19 = arith.constant dense<0.000000e+00> : vector<8x128xf32>
    %56 = vector.multi_reduction <add>, %55, %cst_19 [1] : vector<8x8x128xf32> to vector<8x128xf32>
    %57 = vector.shape_cast %56 : vector<8x128xf32> to vector<8x1x128xf32>
    %58 = vector.broadcast %57 : vector<8x1x128xf32> to vector<8x8x128xf32>
    %59 = arith.mulf %58, %21 : vector<8x8x128xf32>
    %60 = vector.shape_cast %59 : vector<8x8x128xf32> to vector<64x128xf32>
    %61 = arith.truncf %60 : vector<64x128xf32> to vector<64x128xbf16>
    %cst_20 = arith.constant dense<0.000000e+00> : vector<64x16xf32>
    %62 = tpu.matmul %61, %8, %cst_20 {dimension_numbers = #tpu.dot_dimension_numbers<[1], [0], [0], [1], [0, 0, 1, 1], [], []>} : vector<64x128xbf16>, vector<128x16xbf16>, vector<64x16xf32> -> vector<64x16xf32>
    %63 = vector.extract_strided_slice %14 {offsets = [0, 0], sizes = [64, 16], strides = [1, 1]} : vector<64x128xf32> to vector<64x16xf32>
    %64 = arith.addf %62, %63 : vector<64x16xf32>
    %65 = arith.index_cast %12 : i32 to index
    %c0_21 = arith.constant 0 : index
    %66 = vector.load %arg7[%65, %c0_21] : memref<256x16xf32, #tpu.memory_space<vmem>>, vector<64x16xf32>
    tpu.vector_store %arg7[%65, %c0_21], %64 {strides = array<i32>} : memref<256x16xf32, #tpu.memory_space<vmem>>, vector<64x16xf32>,
    %c1_i32 = arith.constant 1 : i32
    %c64_i32_22 = arith.constant 64 : i32
    %67 = arith.muli %c1_i32, %c64_i32_22 : i32
    %68 = tpu.assume_multiple %67, 8 : i32
    %69 = arith.index_cast %68 : i32 to index
    %c0_23 = arith.constant 0 : index
    %70 = vector.load %arg8[%69, %c0_23] : memref<256x384xf32, #tpu.memory_space<vmem>>, vector<64x128xf32>
    %71 = arith.index_cast %68 : i32 to index
    %c128_24 = arith.constant 128 : index
    %72 = vector.load %arg8[%71, %c128_24] : memref<256x384xf32, #tpu.memory_space<vmem>>, vector<64x128xf32>
    %73 = arith.index_cast %68 : i32 to index
    %c256_25 = arith.constant 256 : index
    %74 = vector.load %arg8[%73, %c256_25] : memref<256x384xf32, #tpu.memory_space<vmem>>, vector<64x128xf32>
    %75 = vector.shape_cast %70 : vector<64x128xf32> to vector<8x8x128xf32>
    %76 = vector.shape_cast %72 : vector<64x128xf32> to vector<8x8x128xf32>
    %77 = vector.shape_cast %74 : vector<64x128xf32> to vector<8x8x128xf32>
    %78 = vector.broadcast %5 : vector<1x1x128xf32> to vector<8x8x128xf32>
    %79 = arith.mulf %75, %78 : vector<8x8x128xf32>
    %80 = vector.broadcast %10 : vector<1x1x128xf32> to vector<8x8x128xf32>
    %81 = arith.addf %79, %80 : vector<8x8x128xf32>
    %cst_26 = arith.constant dense<0xFF800000> : vector<8x8xf32>
    %82 = vector.multi_reduction <maximumf>, %81, %cst_26 [2] : vector<8x8x128xf32> to vector<8x8xf32>
    %83 = vector.shape_cast %82 : vector<8x8xf32> to vector<8x8x1xf32>
    %84 = vector.broadcast %83 : vector<8x8x1xf32> to vector<8x8x128xf32>
    %85 = arith.subf %81, %84 : vector<8x8x128xf32>
    %86 = math.exp %85 : vector<8x8x128xf32>
    %cst_27 = arith.constant dense<0.000000e+00> : vector<8x8xf32>
    %87 = vector.multi_reduction <add>, %86, %cst_27 [2] : vector<8x8x128xf32> to vector<8x8xf32>
    %88 = vector.shape_cast %87 : vector<8x8xf32> to vector<8x8x1xf32>
    %89 = tpu.reciprocal %88 {approx = true} : vector<8x8x1xf32> -> vector<8x8x1xf32>
    %90 = vector.broadcast %89 : vector<8x8x1xf32> to vector<8x8x128xf32>
    %91 = arith.mulf %86, %90 : vector<8x8x128xf32>
    %92 = arith.mulf %75, %91 : vector<8x8x128xf32>
    %cst_28 = arith.constant dense<0.000000e+00> : vector<8x128xf32>
    %93 = vector.multi_reduction <add>, %92, %cst_28 [1] : vector<8x8x128xf32> to vector<8x128xf32>
    %94 = vector.shape_cast %93 : vector<8x128xf32> to vector<8x1x128xf32>
    %95 = vector.broadcast %94 : vector<8x1x128xf32> to vector<8x8x128xf32>
    %96 = arith.mulf %95, %76 : vector<8x8x128xf32>
    %97 = vector.broadcast %7 : vector<1x1x128xf32> to vector<8x8x128xf32>
    %98 = arith.mulf %96, %97 : vector<8x8x128xf32>
    %99 = vector.broadcast %10 : vector<1x1x128xf32> to vector<8x8x128xf32>
    %100 = arith.addf %98, %99 : vector<8x8x128xf32>
    %cst_29 = arith.constant dense<0xFF800000> : vector<8x8xf32>
    %101 = vector.multi_reduction <maximumf>, %100, %cst_29 [2] : vector<8x8x128xf32> to vector<8x8xf32>
    %102 = vector.shape_cast %101 : vector<8x8xf32> to vector<8x8x1xf32>
    %103 = vector.broadcast %102 : vector<8x8x1xf32> to vector<8x8x128xf32>
    %104 = arith.subf %100, %103 : vector<8x8x128xf32>
    %105 = math.exp %104 : vector<8x8x128xf32>
    %cst_30 = arith.constant dense<0.000000e+00> : vector<8x8xf32>
    %106 = vector.multi_reduction <add>, %105, %cst_30 [2] : vector<8x8x128xf32> to vector<8x8xf32>
    %107 = vector.shape_cast %106 : vector<8x8xf32> to vector<8x8x1xf32>
    %108 = tpu.reciprocal %107 {approx = true} : vector<8x8x1xf32> -> vector<8x8x1xf32>
    %109 = vector.broadcast %108 : vector<8x8x1xf32> to vector<8x8x128xf32>
    %110 = arith.mulf %105, %109 : vector<8x8x128xf32>
    %111 = arith.mulf %96, %110 : vector<8x8x128xf32>
    %cst_31 = arith.constant dense<0.000000e+00> : vector<8x128xf32>
    %112 = vector.multi_reduction <add>, %111, %cst_31 [1] : vector<8x8x128xf32> to vector<8x128xf32>
    %113 = vector.shape_cast %112 : vector<8x128xf32> to vector<8x1x128xf32>
    %114 = vector.broadcast %113 : vector<8x1x128xf32> to vector<8x8x128xf32>
    %115 = arith.mulf %114, %77 : vector<8x8x128xf32>
    %116 = vector.shape_cast %115 : vector<8x8x128xf32> to vector<64x128xf32>
    %117 = arith.truncf %116 : vector<64x128xf32> to vector<64x128xbf16>
    %cst_32 = arith.constant dense<0.000000e+00> : vector<64x16xf32>
    %118 = tpu.matmul %117, %8, %cst_32 {dimension_numbers = #tpu.dot_dimension_numbers<[1], [0], [0], [1], [0, 0, 1, 1], [], []>} : vector<64x128xbf16>, vector<128x16xbf16>, vector<64x16xf32> -> vector<64x16xf32>
    %119 = vector.extract_strided_slice %70 {offsets = [0, 0], sizes = [64, 16], strides = [1, 1]} : vector<64x128xf32> to vector<64x16xf32>
    %120 = arith.addf %118, %119 : vector<64x16xf32>
    %121 = arith.index_cast %68 : i32 to index
    %c0_33 = arith.constant 0 : index
    %122 = vector.load %arg7[%121, %c0_33] : memref<256x16xf32, #tpu.memory_space<vmem>>, vector<64x16xf32>
    tpu.vector_store %arg7[%121, %c0_33], %120 {strides = array<i32>} : memref<256x16xf32, #tpu.memory_space<vmem>>, vector<64x16xf32>,
    %c2_i32 = arith.constant 2 : i32
    %c64_i32_34 = arith.constant 64 : i32
    %123 = arith.muli %c2_i32, %c64_i32_34 : i32
    %124 = tpu.assume_multiple %123, 8 : i32
    %125 = arith.index_cast %124 : i32 to index
    %c0_35 = arith.constant 0 : index
    %126 = vector.load %arg8[%125, %c0_35] : memref<256x384xf32, #tpu.memory_space<vmem>>, vector<64x128xf32>
    %127 = arith.index_cast %124 : i32 to index
    %c128_36 = arith.constant 128 : index
    %128 = vector.load %arg8[%127, %c128_36] : memref<256x384xf32, #tpu.memory_space<vmem>>, vector<64x128xf32>
    %129 = arith.index_cast %124 : i32 to index
    %c256_37 = arith.constant 256 : index
    %130 = vector.load %arg8[%129, %c256_37] : memref<256x384xf32, #tpu.memory_space<vmem>>, vector<64x128xf32>
    %131 = vector.shape_cast %126 : vector<64x128xf32> to vector<8x8x128xf32>
    %132 = vector.shape_cast %128 : vector<64x128xf32> to vector<8x8x128xf32>
    %133 = vector.shape_cast %130 : vector<64x128xf32> to vector<8x8x128xf32>
    %134 = vector.broadcast %5 : vector<1x1x128xf32> to vector<8x8x128xf32>
    %135 = arith.mulf %131, %134 : vector<8x8x128xf32>
    %136 = vector.broadcast %10 : vector<1x1x128xf32> to vector<8x8x128xf32>
    %137 = arith.addf %135, %136 : vector<8x8x128xf32>
    %cst_38 = arith.constant dense<0xFF800000> : vector<8x8xf32>
    %138 = vector.multi_reduction <maximumf>, %137, %cst_38 [2] : vector<8x8x128xf32> to vector<8x8xf32>
    %139 = vector.shape_cast %138 : vector<8x8xf32> to vector<8x8x1xf32>
    %140 = vector.broadcast %139 : vector<8x8x1xf32> to vector<8x8x128xf32>
    %141 = arith.subf %137, %140 : vector<8x8x128xf32>
    %142 = math.exp %141 : vector<8x8x128xf32>
    %cst_39 = arith.constant dense<0.000000e+00> : vector<8x8xf32>
    %143 = vector.multi_reduction <add>, %142, %cst_39 [2] : vector<8x8x128xf32> to vector<8x8xf32>
    %144 = vector.shape_cast %143 : vector<8x8xf32> to vector<8x8x1xf32>
    %145 = tpu.reciprocal %144 {approx = true} : vector<8x8x1xf32> -> vector<8x8x1xf32>
    %146 = vector.broadcast %145 : vector<8x8x1xf32> to vector<8x8x128xf32>
    %147 = arith.mulf %142, %146 : vector<8x8x128xf32>
    %148 = arith.mulf %131, %147 : vector<8x8x128xf32>
    %cst_40 = arith.constant dense<0.000000e+00> : vector<8x128xf32>
    %149 = vector.multi_reduction <add>, %148, %cst_40 [1] : vector<8x8x128xf32> to vector<8x128xf32>
    %150 = vector.shape_cast %149 : vector<8x128xf32> to vector<8x1x128xf32>
    %151 = vector.broadcast %150 : vector<8x1x128xf32> to vector<8x8x128xf32>
    %152 = arith.mulf %151, %132 : vector<8x8x128xf32>
    %153 = vector.broadcast %7 : vector<1x1x128xf32> to vector<8x8x128xf32>
    %154 = arith.mulf %152, %153 : vector<8x8x128xf32>
    %155 = vector.broadcast %10 : vector<1x1x128xf32> to vector<8x8x128xf32>
    %156 = arith.addf %154, %155 : vector<8x8x128xf32>
    %cst_41 = arith.constant dense<0xFF800000> : vector<8x8xf32>
    %157 = vector.multi_reduction <maximumf>, %156, %cst_41 [2] : vector<8x8x128xf32> to vector<8x8xf32>
    %158 = vector.shape_cast %157 : vector<8x8xf32> to vector<8x8x1xf32>
    %159 = vector.broadcast %158 : vector<8x8x1xf32> to vector<8x8x128xf32>
    %160 = arith.subf %156, %159 : vector<8x8x128xf32>
    %161 = math.exp %160 : vector<8x8x128xf32>
    %cst_42 = arith.constant dense<0.000000e+00> : vector<8x8xf32>
    %162 = vector.multi_reduction <add>, %161, %cst_42 [2] : vector<8x8x128xf32> to vector<8x8xf32>
    %163 = vector.shape_cast %162 : vector<8x8xf32> to vector<8x8x1xf32>
    %164 = tpu.reciprocal %163 {approx = true} : vector<8x8x1xf32> -> vector<8x8x1xf32>
    %165 = vector.broadcast %164 : vector<8x8x1xf32> to vector<8x8x128xf32>
    %166 = arith.mulf %161, %165 : vector<8x8x128xf32>
    %167 = arith.mulf %152, %166 : vector<8x8x128xf32>
    %cst_43 = arith.constant dense<0.000000e+00> : vector<8x128xf32>
    %168 = vector.multi_reduction <add>, %167, %cst_43 [1] : vector<8x8x128xf32> to vector<8x128xf32>
    %169 = vector.shape_cast %168 : vector<8x128xf32> to vector<8x1x128xf32>
    %170 = vector.broadcast %169 : vector<8x1x128xf32> to vector<8x8x128xf32>
    %171 = arith.mulf %170, %133 : vector<8x8x128xf32>
    %172 = vector.shape_cast %171 : vector<8x8x128xf32> to vector<64x128xf32>
    %173 = arith.truncf %172 : vector<64x128xf32> to vector<64x128xbf16>
    %cst_44 = arith.constant dense<0.000000e+00> : vector<64x16xf32>
    %174 = tpu.matmul %173, %8, %cst_44 {dimension_numbers = #tpu.dot_dimension_numbers<[1], [0], [0], [1], [0, 0, 1, 1], [], []>} : vector<64x128xbf16>, vector<128x16xbf16>, vector<64x16xf32> -> vector<64x16xf32>
    %175 = vector.extract_strided_slice %126 {offsets = [0, 0], sizes = [64, 16], strides = [1, 1]} : vector<64x128xf32> to vector<64x16xf32>
    %176 = arith.addf %174, %175 : vector<64x16xf32>
    %177 = arith.index_cast %124 : i32 to index
    %c0_45 = arith.constant 0 : index
    %178 = vector.load %arg7[%177, %c0_45] : memref<256x16xf32, #tpu.memory_space<vmem>>, vector<64x16xf32>
    tpu.vector_store %arg7[%177, %c0_45], %176 {strides = array<i32>} : memref<256x16xf32, #tpu.memory_space<vmem>>, vector<64x16xf32>,
    %c3_i32 = arith.constant 3 : i32
    %c64_i32_46 = arith.constant 64 : i32
    %179 = arith.muli %c3_i32, %c64_i32_46 : i32
    %180 = tpu.assume_multiple %179, 8 : i32
    %181 = arith.index_cast %180 : i32 to index
    %c0_47 = arith.constant 0 : index
    %182 = vector.load %arg8[%181, %c0_47] : memref<256x384xf32, #tpu.memory_space<vmem>>, vector<64x128xf32>
    %183 = arith.index_cast %180 : i32 to index
    %c128_48 = arith.constant 128 : index
    %184 = vector.load %arg8[%183, %c128_48] : memref<256x384xf32, #tpu.memory_space<vmem>>, vector<64x128xf32>
    %185 = arith.index_cast %180 : i32 to index
    %c256_49 = arith.constant 256 : index
    %186 = vector.load %arg8[%185, %c256_49] : memref<256x384xf32, #tpu.memory_space<vmem>>, vector<64x128xf32>
    %187 = vector.shape_cast %182 : vector<64x128xf32> to vector<8x8x128xf32>
    %188 = vector.shape_cast %184 : vector<64x128xf32> to vector<8x8x128xf32>
    %189 = vector.shape_cast %186 : vector<64x128xf32> to vector<8x8x128xf32>
    %190 = vector.broadcast %5 : vector<1x1x128xf32> to vector<8x8x128xf32>
    %191 = arith.mulf %187, %190 : vector<8x8x128xf32>
    %192 = vector.broadcast %10 : vector<1x1x128xf32> to vector<8x8x128xf32>
    %193 = arith.addf %191, %192 : vector<8x8x128xf32>
    %cst_50 = arith.constant dense<0xFF800000> : vector<8x8xf32>
    %194 = vector.multi_reduction <maximumf>, %193, %cst_50 [2] : vector<8x8x128xf32> to vector<8x8xf32>
    %195 = vector.shape_cast %194 : vector<8x8xf32> to vector<8x8x1xf32>
    %196 = vector.broadcast %195 : vector<8x8x1xf32> to vector<8x8x128xf32>
    %197 = arith.subf %193, %196 : vector<8x8x128xf32>
    %198 = math.exp %197 : vector<8x8x128xf32>
    %cst_51 = arith.constant dense<0.000000e+00> : vector<8x8xf32>
    %199 = vector.multi_reduction <add>, %198, %cst_51 [2] : vector<8x8x128xf32> to vector<8x8xf32>
    %200 = vector.shape_cast %199 : vector<8x8xf32> to vector<8x8x1xf32>
    %201 = tpu.reciprocal %200 {approx = true} : vector<8x8x1xf32> -> vector<8x8x1xf32>
    %202 = vector.broadcast %201 : vector<8x8x1xf32> to vector<8x8x128xf32>
    %203 = arith.mulf %198, %202 : vector<8x8x128xf32>
    %204 = arith.mulf %187, %203 : vector<8x8x128xf32>
    %cst_52 = arith.constant dense<0.000000e+00> : vector<8x128xf32>
    %205 = vector.multi_reduction <add>, %204, %cst_52 [1] : vector<8x8x128xf32> to vector<8x128xf32>
    %206 = vector.shape_cast %205 : vector<8x128xf32> to vector<8x1x128xf32>
    %207 = vector.broadcast %206 : vector<8x1x128xf32> to vector<8x8x128xf32>
    %208 = arith.mulf %207, %188 : vector<8x8x128xf32>
    %209 = vector.broadcast %7 : vector<1x1x128xf32> to vector<8x8x128xf32>
    %210 = arith.mulf %208, %209 : vector<8x8x128xf32>
    %211 = vector.broadcast %10 : vector<1x1x128xf32> to vector<8x8x128xf32>
    %212 = arith.addf %210, %211 : vector<8x8x128xf32>
    %cst_53 = arith.constant dense<0xFF800000> : vector<8x8xf32>
    %213 = vector.multi_reduction <maximumf>, %212, %cst_53 [2] : vector<8x8x128xf32> to vector<8x8xf32>
    %214 = vector.shape_cast %213 : vector<8x8xf32> to vector<8x8x1xf32>
    %215 = vector.broadcast %214 : vector<8x8x1xf32> to vector<8x8x128xf32>
    %216 = arith.subf %212, %215 : vector<8x8x128xf32>
    %217 = math.exp %216 : vector<8x8x128xf32>
    %cst_54 = arith.constant dense<0.000000e+00> : vector<8x8xf32>
    %218 = vector.multi_reduction <add>, %217, %cst_54 [2] : vector<8x8x128xf32> to vector<8x8xf32>
    %219 = vector.shape_cast %218 : vector<8x8xf32> to vector<8x8x1xf32>
    %220 = tpu.reciprocal %219 {approx = true} : vector<8x8x1xf32> -> vector<8x8x1xf32>
    %221 = vector.broadcast %220 : vector<8x8x1xf32> to vector<8x8x128xf32>
    %222 = arith.mulf %217, %221 : vector<8x8x128xf32>
    %223 = arith.mulf %208, %222 : vector<8x8x128xf32>
    %cst_55 = arith.constant dense<0.000000e+00> : vector<8x128xf32>
    %224 = vector.multi_reduction <add>, %223, %cst_55 [1] : vector<8x8x128xf32> to vector<8x128xf32>
    %225 = vector.shape_cast %224 : vector<8x128xf32> to vector<8x1x128xf32>
    %226 = vector.broadcast %225 : vector<8x1x128xf32> to vector<8x8x128xf32>
    %227 = arith.mulf %226, %189 : vector<8x8x128xf32>
    %228 = vector.shape_cast %227 : vector<8x8x128xf32> to vector<64x128xf32>
    %229 = arith.truncf %228 : vector<64x128xf32> to vector<64x128xbf16>
    %cst_56 = arith.constant dense<0.000000e+00> : vector<64x16xf32>
    %230 = tpu.matmul %229, %8, %cst_56 {dimension_numbers = #tpu.dot_dimension_numbers<[1], [0], [0], [1], [0, 0, 1, 1], [], []>} : vector<64x128xbf16>, vector<128x16xbf16>, vector<64x16xf32> -> vector<64x16xf32>
    %231 = vector.extract_strided_slice %182 {offsets = [0, 0], sizes = [64, 16], strides = [1, 1]} : vector<64x128xf32> to vector<64x16xf32>
    %232 = arith.addf %230, %231 : vector<64x16xf32>
    %233 = arith.index_cast %180 : i32 to index
    %c0_57 = arith.constant 0 : index
    %234 = vector.load %arg7[%233, %c0_57] : memref<256x16xf32, #tpu.memory_space<vmem>>, vector<64x16xf32>
    tpu.vector_store %arg7[%233, %c0_57], %232 {strides = array<i32>} : memref<256x16xf32, #tpu.memory_space<vmem>>, vector<64x16xf32>,
    %c4_i32 = arith.constant 4 : i32
    return
  }
  func.func @transform_0(%arg0: i32) -> (i32, i32) {
    %c0_i32 = arith.constant 0 : i32
    %c0_i32_0 = arith.constant 0 : i32
    return %arg0, %c0_i32 : i32, i32
  }
  func.func @transform_1(%arg0: i32) -> (i32, i32) {
    %c0_i32 = arith.constant 0 : i32
    %c0_i32_0 = arith.constant 0 : i32
    %c0_i32_1 = arith.constant 0 : i32
    return %c0_i32, %c0_i32_0 : i32, i32
  }
  func.func @transform_2(%arg0: i32) -> (i32, i32) {
    %c0_i32 = arith.constant 0 : i32
    %c0_i32_0 = arith.constant 0 : i32
    %c0_i32_1 = arith.constant 0 : i32
    return %c0_i32, %c0_i32_0 : i32, i32
  }
  func.func @transform_3(%arg0: i32) -> (i32, i32) {
    %c0_i32 = arith.constant 0 : i32
    %c0_i32_0 = arith.constant 0 : i32
    %c0_i32_1 = arith.constant 0 : i32
    return %c0_i32, %c0_i32_0 : i32, i32
  }
  func.func @transform_4(%arg0: i32) -> (i32, i32) {
    %c0_i32 = arith.constant 0 : i32
    %c0_i32_0 = arith.constant 0 : i32
    %c0_i32_1 = arith.constant 0 : i32
    return %c0_i32, %c0_i32_0 : i32, i32
  }
  func.func @transform_5(%arg0: i32) -> (i32, i32) {
    %c0_i32 = arith.constant 0 : i32
    %c0_i32_0 = arith.constant 0 : i32
    %c0_i32_1 = arith.constant 0 : i32
    return %c0_i32, %c0_i32_0 : i32, i32
  }
  func.func @transform_6(%arg0: i32) -> (i32, i32) {
    %c0_i32 = arith.constant 0 : i32
    %c0_i32_0 = arith.constant 0 : i32
    return %arg0, %c0_i32 : i32, i32
  }
}

</mosaic_0001>

<llo_original>
// kernel: tpu_custom_call.1
$region0: #{tpu_custom_call.1}
  #allocation0 [shape = 'u32[]', space=smem, size = 0x4, offset = 0x4, fixed_abs, tag = 'smem constant byte address 0x4 - core index']
  #allocation1 [shape = 'u32[144,128]{1,0:T(1,128)}', space=vmem, size = 0x12000, scoped, tag = 'internal scratch']
  #allocation2 [shape = 'f32[256,384]{1,0:T(8,128)}', space=vmem, size = 0x60000, scoped, tag = 'scratch operand']
  %s0 = inlined_call_operand.vmem [shape: bf16[256,32], index: 0, kind: input, shape index: {}]
  %s1 = inlined_call_operand.vmem [shape: bf16[32,384], index: 1, kind: input, shape index: {}]
  %s2 = inlined_call_operand.vmem [shape: bf16[128,16], index: 2, kind: input, shape index: {}]
  %s3 = inlined_call_operand.vmem [shape: f32[1,128], index: 3, kind: input, shape index: {}]
  %s4 = inlined_call_operand.vmem [shape: f32[1,128], index: 4, kind: input, shape index: {}]
  %s5 = inlined_call_operand.vmem [shape: f32[1,128], index: 5, kind: input, shape index: {}]
  %s6 = inlined_call_operand.vmem [shape: f32[256,16], index: 6, kind: output, shape index: {}]
  %s7 = sld [smem:[#allocation0]]
  $region34: #{tpu_custom_call.1} parent=0
    _
  %s9 = ssub.s32 1, %s7
  %s10 = scalar_select 0, %s9, %s7
  // Predicated region
  $region2: #{tpu_custom_call.1} parent=0 // pred_check
    _
  $region3: #{tpu_custom_call.1} parent=0 // pred_check_branch
    %12 = sbr.rel (0) target = $region5
  $region4: #{tpu_custom_call.1} parent=0 // pred_region
    _
  $region5: #{tpu_custom_call.1} parent=0 // pred_fallthru
    _
  // Predicated region
  $region6: #{tpu_custom_call.1} parent=0 // pred_check
    _
  $region7: #{tpu_custom_call.1} parent=0 // pred_check_branch
    %14 = sbr.rel (0) target = $region9
  $region8: #{tpu_custom_call.1} parent=0 // pred_region
    _
  $region9: #{tpu_custom_call.1} parent=0 // pred_fallthru
    _
  // Predicated region
  $region10: #{tpu_custom_call.1} parent=0 // pred_check
    _
  $region11: #{tpu_custom_call.1} parent=0 // pred_check_branch
    %16 = sbr.rel (0) target = $region13
  $region12: #{tpu_custom_call.1} parent=0 // pred_region
    _
  $region13: #{tpu_custom_call.1} parent=0 // pred_fallthru
    _
  // Predicated region
  $region14: #{tpu_custom_call.1} parent=0 // pred_check
    _
  $region15: #{tpu_custom_call.1} parent=0 // pred_check_branch
    %18 = sbr.rel (0) target = $region17
  $region16: #{tpu_custom_call.1} parent=0 // pred_region
    _
  $region17: #{tpu_custom_call.1} parent=0 // pred_fallthru
    _
  // Predicated region
  $region18: #{tpu_custom_call.1} parent=0 // pred_check
    _
  $region19: #{tpu_custom_call.1} parent=0 // pred_check_branch
    %20 = sbr.rel (0) target = $region21
  $region20: #{tpu_custom_call.1} parent=0 // pred_region
    _
  $region21: #{tpu_custom_call.1} parent=0 // pred_fallthru
    _
  // Predicated region
  $region22: #{tpu_custom_call.1} parent=0 // pred_check
    _
  $region23: #{tpu_custom_call.1} parent=0 // pred_check_branch
    %22 = sbr.rel (0) target = $region25
  $region24: #{tpu_custom_call.1} parent=0 // pred_region
    _
  $region25: #{tpu_custom_call.1} parent=0 // pred_fallthru
    _
  %v24 = vld [vmem:[%s0] sm:$0xf]
  %v25 = vld [vmem:[%s0 + $0x4] sm:$0xf]
  %v26 = vld [vmem:[%s0 + $0x8] sm:$0xf]
  %v27 = vld [vmem:[%s0 + $0xc] sm:$0xf]
  %v28 = vld [vmem:[%s0 + $0x10] sm:$0xf]
  %v29 = vld [vmem:[%s0 + $0x14] sm:$0xf]
  %v30 = vld [vmem:[%s0 + $0x18] sm:$0xf]
  %v31 = vld [vmem:[%s0 + $0x1c] sm:$0xf]
  %v32 = vld [vmem:[%s0 + $0x20] sm:$0xf]
  %v33 = vld [vmem:[%s0 + $0x24] sm:$0xf]
  %v34 = vld [vmem:[%s0 + $0x28] sm:$0xf]
  %v35 = vld [vmem:[%s0 + $0x2c] sm:$0xf]
  %v36 = vld [vmem:[%s0 + $0x30] sm:$0xf]
  %v37 = vld [vmem:[%s0 + $0x34] sm:$0xf]
  %v38 = vld [vmem:[%s0 + $0x38] sm:$0xf]
  %v39 = vld [vmem:[%s0 + $0x3c] sm:$0xf]
  %v40 = vld [vmem:[%s0 + $0x40] sm:$0xf]
  %v41 = vld [vmem:[%s0 + $0x44] sm:$0xf]
  %v42 = vld [vmem:[%s0 + $0x48] sm:$0xf]
  %v43 = vld [vmem:[%s0 + $0x4c] sm:$0xf]
  %v44 = vld [vmem:[%s0 + $0x50] sm:$0xf]
  %v45 = vld [vmem:[%s0 + $0x54] sm:$0xf]
  %v46 = vld [vmem:[%s0 + $0x58] sm:$0xf]
  %v47 = vld [vmem:[%s0 + $0x5c] sm:$0xf]
  %v48 = vld [vmem:[%s0 + $0x60] sm:$0xf]
  %v49 = vld [vmem:[%s0 + $0x64] sm:$0xf]
  %v50 = vld [vmem:[%s0 + $0x68] sm:$0xf]
  %v51 = vld [vmem:[%s0 + $0x6c] sm:$0xf]
  %v52 = vld [vmem:[%s0 + $0x70] sm:$0xf]
  %v53 = vld [vmem:[%s0 + $0x74] sm:$0xf]
  %v54 = vld [vmem:[%s0 + $0x78] sm:$0xf]
  %v55 = vld [vmem:[%s0 + $0x7c] sm:$0xf]
  %v56 = vld [vmem:[%s1] sm:$0xff]
  %v57 = vld [vmem:[%s1 + $0x8] sm:$0xf]
  %v58 = vld [vmem:[%s1 + $0xc] sm:$0xff]
  %v59 = vld [vmem:[%s1 + $0x14] sm:$0xf]
  %v60 = vld [vmem:[%s1 + $0x18] sm:$0xff]
  %v61 = vld [vmem:[%s1 + $0x20] sm:$0xf]
  %v62 = vld [vmem:[%s1 + $0x24] sm:$0xff]
  %v63 = vld [vmem:[%s1 + $0x2c] sm:$0xf]
  %v96 = vunpack.c.l.b16 %v24
  %v97 = vunpack.c.l.b16 %v25
  %v98 = vunpack.c.l.b16 %v26
  %v99 = vunpack.c.l.b16 %v27
  %v100 = vunpack.c.l.b16 %v28
  %v101 = vunpack.c.l.b16 %v29
  %v102 = vunpack.c.l.b16 %v30
  %v103 = vunpack.c.l.b16 %v31
  %v104 = vunpack.c.l.b16 %v32
  %v105 = vunpack.c.l.b16 %v33
  %v106 = vunpack.c.l.b16 %v34
  %v107 = vunpack.c.l.b16 %v35
  %v108 = vunpack.c.l.b16 %v36
  %v109 = vunpack.c.l.b16 %v37
  %v110 = vunpack.c.l.b16 %v38
  %v111 = vunpack.c.l.b16 %v39
  %v112 = vunpack.c.l.b16 %v40
  %v113 = vunpack.c.l.b16 %v41
  %v114 = vunpack.c.l.b16 %v42
  %v115 = vunpack.c.l.b16 %v43
  %v116 = vunpack.c.l.b16 %v44
  %v117 = vunpack.c.l.b16 %v45
  %v118 = vunpack.c.l.b16 %v46
  %v119 = vunpack.c.l.b16 %v47
  %v120 = vunpack.c.l.b16 %v48
  %v121 = vunpack.c.l.b16 %v49
  %v122 = vunpack.c.l.b16 %v50
  %v123 = vunpack.c.l.b16 %v51
  %v124 = vunpack.c.l.b16 %v52
  %v125 = vunpack.c.l.b16 %v53
  %v126 = vunpack.c.l.b16 %v54
  %v127 = vunpack.c.l.b16 %v55
  %v128 = vpack.c.b16 %v97, %v96
  %v129 = vpack.c.b16 %v99, %v98
  %v130 = vpack.c.b16 %v101, %v100
  %v131 = vpack.c.b16 %v103, %v102
  %v132 = vpack.c.b16 %v105, %v104
  %v133 = vpack.c.b16 %v107, %v106
  %v134 = vpack.c.b16 %v109, %v108
  %v135 = vpack.c.b16 %v111, %v110
  %v136 = vpack.c.b16 %v113, %v112
  %v137 = vpack.c.b16 %v115, %v114
  %v138 = vpack.c.b16 %v117, %v116
  %v139 = vpack.c.b16 %v119, %v118
  %v140 = vpack.c.b16 %v121, %v120
  %v141 = vpack.c.b16 %v123, %v122
  %v142 = vpack.c.b16 %v125, %v124
  %v143 = vpack.c.b16 %v127, %v126
  %v152 = vunpack.c.l.b16 %v56
  %v153 = vunpack.c.h.b16 %v56
  %v154 = vunpack.c.l.b16 %v57
  %v155 = vunpack.c.l.b16 %v58
  %v156 = vunpack.c.h.b16 %v58
  %v157 = vunpack.c.l.b16 %v59
  %v158 = vunpack.c.l.b16 %v60
  %v159 = vunpack.c.h.b16 %v60
  %v160 = vunpack.c.l.b16 %v61
  %v161 = vunpack.c.l.b16 %v62
  %v162 = vunpack.c.h.b16 %v62
  %v163 = vunpack.c.l.b16 %v63
  %v164 = vpack.c.b16 %v155, %v152
  %v165 = vpack.c.b16 %v156, %v153
  %v166 = vpack.c.b16 %v157, %v154
  %v167 = vpack.c.b16 %v161, %v158
  %v168 = vpack.c.b16 %v162, %v159
  %v169 = vpack.c.b16 %v163, %v160
  %vm176 = vcmask 261120
  %v178 = vsel %vm176, %v128, 0
  %v181 = vsel %vm176, %v129, 0
  %v184 = vsel %vm176, %v130, 0
  %v187 = vsel %vm176, %v131, 0
  %v190 = vsel %vm176, %v132, 0
  %v193 = vsel %vm176, %v133, 0
  %v196 = vsel %vm176, %v134, 0
  %v199 = vsel %vm176, %v135, 0
  %v202 = vsel %vm176, %v136, 0
  %v205 = vsel %vm176, %v137, 0
  %v208 = vsel %vm176, %v138, 0
  %v211 = vsel %vm176, %v139, 0
  %v214 = vsel %vm176, %v140, 0
  %v217 = vsel %vm176, %v141, 0
  %v220 = vsel %vm176, %v142, 0
  %v223 = vsel %vm176, %v143, 0
  %225 = vmatprep.subr.bf16.mxu0 0
  %226 = vmatpush1.bf16.msra.mxu0 0
  %227 = vmatprep.subr.bf16.mxu0 0
  %228 = vmatpush1.bf16.msra.mxu0 0
  %229 = vmatprep.subr.bf16.mxu0 0
  %230 = vmatpush1.bf16.msra.mxu0 0
  %231 = vmatprep.subr.bf16.mxu0 0
  %232 = vmatpush1.bf16.msra.mxu0 0
  %233 = vmatprep.subr.bf16.mxu0 0
  %234 = vmatpush1.bf16.msra.mxu0 0
  %235 = vmatprep.subr.bf16.mxu0 0
  %236 = vmatpush1.bf16.msra.mxu0 0
  %237 = vmatprep.subr.bf16.mxu0 %v168
  %238 = vmatpush1.bf16.msra.mxu0 %v167
  %239 = vmatprep.subr.bf16.mxu0 %v165
  %240 = vmatpush1.bf16.msra.mxu0 %v164
  %241 = vmatprep.subr.bf16.mxu0 0
  %242 = vmatpush2.bf16.msra.mxu0 0
  %243 = vmatprep.subr.bf16.mxu0 0
  %244 = vmatpush2.bf16.msra.mxu0 0
  %245 = vmatprep.subr.bf16.mxu0 0
  %246 = vmatpush2.bf16.msra.mxu0 0
  %247 = vmatprep.subr.bf16.mxu0 0
  %248 = vmatpush2.bf16.msra.mxu0 0
  %249 = vmatprep.subr.bf16.mxu0 0
  %250 = vmatpush2.bf16.msra.mxu0 0
  %251 = vmatprep.subr.bf16.mxu0 0
  %252 = vmatpush2.bf16.msra.mxu0 0
  %253 = vmatprep.subr.bf16.mxu0 0
  %254 = vmatpush2.bf16.msra.mxu0 0
  %255 = vmatprep.subr.bf16.mxu0 0
  %256 = vmatpush2.bf16.msra.mxu0 0
  %257 = vmatprep.mubr.bf16.mxu0 0
  %258 = vmatmul.mubr.bf16.gmra.mxu0 %v178
  %v259 = vpop.f32.mrf.mxu0
  %v260 = vadd.f32 0.0, %v259
  %v261 = vpop.f32.mrf.mxu0
  %v262 = vadd.f32 0.0, %v261
  %v263 = vpop.f32.mrf.mxu0
  %v264 = vadd.f32 0.0, %v263
  %v265 = vpop.f32.mrf.mxu0
  %v266 = vadd.f32 0.0, %v265
  %267 = vmatprep.mubr.bf16.mxu0 0
  %268 = vmatmul.mubr.bf16.gmra.mxu0 %v181
  %v269 = vpop.f32.mrf.mxu0
  %v270 = vadd.f32 0.0, %v269
  %v271 = vpop.f32.mrf.mxu0
  %v272 = vadd.f32 0.0, %v271
  %v273 = vpop.f32.mrf.mxu0
  %v274 = vadd.f32 0.0, %v273
  %v275 = vpop.f32.mrf.mxu0
  %v276 = vadd.f32 0.0, %v275
  %277 = vmatprep.mubr.bf16.mxu0 0
  %278 = vmatmul.mubr.bf16.gmra.mxu0 %v184
  %v279 = vpop.f32.mrf.mxu0
  %v280 = vadd.f32 0.0, %v279
  %v281 = vpop.f32.mrf.mxu0
  %v282 = vadd.f32 0.0, %v281
  %v283 = vpop.f32.mrf.mxu0
  %v284 = vadd.f32 0.0, %v283
  %v285 = vpop.f32.mrf.mxu0
  %v286 = vadd.f32 0.0, %v285
  %287 = vmatprep.mubr.bf16.mxu0 0
  %288 = vmatmul.mubr.bf16.gmra.mxu0 %v187
  %v289 = vpop.f32.mrf.mxu0
  %v290 = vadd.f32 0.0, %v289
  %v291 = vpop.f32.mrf.mxu0
  %v292 = vadd.f32 0.0, %v291
  %v293 = vpop.f32.mrf.mxu0
  %v294 = vadd.f32 0.0, %v293
  %v295 = vpop.f32.mrf.mxu0
  %v296 = vadd.f32 0.0, %v295
  %297 = vmatprep.mubr.bf16.mxu0 0
  %298 = vmatmul.mubr.bf16.gmra.mxu0 %v190
  %v299 = vpop.f32.mrf.mxu0
  %v300 = vadd.f32 0.0, %v299
  %v301 = vpop.f32.mrf.mxu0
  %v302 = vadd.f32 0.0, %v301
  %v303 = vpop.f32.mrf.mxu0
  %v304 = vadd.f32 0.0, %v303
  %v305 = vpop.f32.mrf.mxu0
  %v306 = vadd.f32 0.0, %v305
  %307 = vmatprep.mubr.bf16.mxu0 0
  %308 = vmatmul.mubr.bf16.gmra.mxu0 %v193
  %v309 = vpop.f32.mrf.mxu0
  %v310 = vadd.f32 0.0, %v309
  %v311 = vpop.f32.mrf.mxu0
  %v312 = vadd.f32 0.0, %v311
  %v313 = vpop.f32.mrf.mxu0
  %v314 = vadd.f32 0.0, %v313
  %v315 = vpop.f32.mrf.mxu0
  %v316 = vadd.f32 0.0, %v315
  %317 = vmatprep.mubr.bf16.mxu0 0
  %318 = vmatmul.mubr.bf16.gmra.mxu0 %v196
  %v319 = vpop.f32.mrf.mxu0
  %v320 = vadd.f32 0.0, %v319
  %v321 = vpop.f32.mrf.mxu0
  %v322 = vadd.f32 0.0, %v321
  %v323 = vpop.f32.mrf.mxu0
  %v324 = vadd.f32 0.0, %v323
  %v325 = vpop.f32.mrf.mxu0
  %v326 = vadd.f32 0.0, %v325
  %327 = vmatprep.mubr.bf16.mxu0 0
  %328 = vmatmul.mubr.bf16.gmra.mxu0 %v199
  %v329 = vpop.f32.mrf.mxu0
  %v330 = vadd.f32 0.0, %v329
  %v331 = vpop.f32.mrf.mxu0
  %v332 = vadd.f32 0.0, %v331
  %v333 = vpop.f32.mrf.mxu0
  %v334 = vadd.f32 0.0, %v333
  %v335 = vpop.f32.mrf.mxu0
  %v336 = vadd.f32 0.0, %v335
  %337 = vmatprep.mubr.bf16.mxu0 0
  %338 = vmatmul.mubr.bf16.gmra.mxu0 %v202
  %v339 = vpop.f32.mrf.mxu0
  %v340 = vadd.f32 0.0, %v339
  %v341 = vpop.f32.mrf.mxu0
  %v342 = vadd.f32 0.0, %v341
  %v343 = vpop.f32.mrf.mxu0
  %v344 = vadd.f32 0.0, %v343
  %v345 = vpop.f32.mrf.mxu0
  %v346 = vadd.f32 0.0, %v345
  %347 = vmatprep.mubr.bf16.mxu0 0
  %348 = vmatmul.mubr.bf16.gmra.mxu0 %v205
  %v349 = vpop.f32.mrf.mxu0
  %v350 = vadd.f32 0.0, %v349
  %v351 = vpop.f32.mrf.mxu0
  %v352 = vadd.f32 0.0, %v351
  %v353 = vpop.f32.mrf.mxu0
  %v354 = vadd.f32 0.0, %v353
  %v355 = vpop.f32.mrf.mxu0
  %v356 = vadd.f32 0.0, %v355
  %357 = vmatprep.mubr.bf16.mxu0 0
  %358 = vmatmul.mubr.bf16.gmra.mxu0 %v208
  %v359 = vpop.f32.mrf.mxu0
  %v360 = vadd.f32 0.0, %v359
  %v361 = vpop.f32.mrf.mxu0
  %v362 = vadd.f32 0.0, %v361
  %v363 = vpop.f32.mrf.mxu0
  %v364 = vadd.f32 0.0, %v363
  %v365 = vpop.f32.mrf.mxu0
  %v366 = vadd.f32 0.0, %v365
  %367 = vmatprep.mubr.bf16.mxu0 0
  %368 = vmatmul.mubr.bf16.gmra.mxu0 %v211
  %v369 = vpop.f32.mrf.mxu0
  %v370 = vadd.f32 0.0, %v369
  %v371 = vpop.f32.mrf.mxu0
  %v372 = vadd.f32 0.0, %v371
  %v373 = vpop.f32.mrf.mxu0
  %v374 = vadd.f32 0.0, %v373
  %v375 = vpop.f32.mrf.mxu0
  %v376 = vadd.f32 0.0, %v375
  %377 = vmatprep.mubr.bf16.mxu0 0
  %378 = vmatmul.mubr.bf16.gmra.mxu0 %v214
  %v379 = vpop.f32.mrf.mxu0
  %v380 = vadd.f32 0.0, %v379
  %v381 = vpop.f32.mrf.mxu0
  %v382 = vadd.f32 0.0, %v381
  %v383 = vpop.f32.mrf.mxu0
  %v384 = vadd.f32 0.0, %v383
  %v385 = vpop.f32.mrf.mxu0
  %v386 = vadd.f32 0.0, %v385
  %387 = vmatprep.mubr.bf16.mxu0 0
  %388 = vmatmul.mubr.bf16.gmra.mxu0 %v217
  %v389 = vpop.f32.mrf.mxu0
  %v390 = vadd.f32 0.0, %v389
  %v391 = vpop.f32.mrf.mxu0
  %v392 = vadd.f32 0.0, %v391
  %v393 = vpop.f32.mrf.mxu0
  %v394 = vadd.f32 0.0, %v393
  %v395 = vpop.f32.mrf.mxu0
  %v396 = vadd.f32 0.0, %v395
  %397 = vmatprep.mubr.bf16.mxu0 0
  %398 = vmatmul.mubr.bf16.gmra.mxu0 %v220
  %v399 = vpop.f32.mrf.mxu0
  %v400 = vadd.f32 0.0, %v399
  %v401 = vpop.f32.mrf.mxu0
  %v402 = vadd.f32 0.0, %v401
  %v403 = vpop.f32.mrf.mxu0
  %v404 = vadd.f32 0.0, %v403
  %v405 = vpop.f32.mrf.mxu0
  %v406 = vadd.f32 0.0, %v405
  %407 = vmatprep.mubr.bf16.mxu0 0
  %408 = vmatmul.mubr.bf16.gmra.mxu0 %v223
  %v409 = vpop.f32.mrf.mxu0
  %v410 = vadd.f32 0.0, %v409
  %v411 = vpop.f32.mrf.mxu0
  %v412 = vadd.f32 0.0, %v411
  %v413 = vpop.f32.mrf.mxu0
  %v414 = vadd.f32 0.0, %v413
  %v415 = vpop.f32.mrf.mxu0
  %v416 = vadd.f32 0.0, %v415
  %417 = vdwg.mxu0
  %418 = vmatprep.subr.bf16.mxu0 0
  %419 = vmatpush1.bf16.msra.mxu0 0
  %420 = vmatprep.subr.bf16.mxu0 0
  %421 = vmatpush1.bf16.msra.mxu0 0
  %422 = vmatprep.subr.bf16.mxu0 0
  %423 = vmatpush1.bf16.msra.mxu0 0
  %424 = vmatprep.subr.bf16.mxu0 0
  %425 = vmatpush1.bf16.msra.mxu0 0
  %426 = vmatprep.subr.bf16.mxu0 0
  %427 = vmatpush1.bf16.msra.mxu0 0
  %428 = vmatprep.subr.bf16.mxu0 0
  %429 = vmatpush1.bf16.msra.mxu0 0
  %430 = vmatprep.subr.bf16.mxu0 0
  %431 = vmatpush1.bf16.msra.mxu0 %v169
  %432 = vmatprep.subr.bf16.mxu0 0
  %433 = vmatpush1.bf16.msra.mxu0 %v166
  %434 = vmatprep.subr.bf16.mxu0 0
  %435 = vmatpush2.bf16.msra.mxu0 0
  %436 = vmatprep.subr.bf16.mxu0 0
  %437 = vmatpush2.bf16.msra.mxu0 0
  %438 = vmatprep.subr.bf16.mxu0 0
  %439 = vmatpush2.bf16.msra.mxu0 0
  %440 = vmatprep.subr.bf16.mxu0 0
  %441 = vmatpush2.bf16.msra.mxu0 0
  %442 = vmatprep.subr.bf16.mxu0 0
  %443 = vmatpush2.bf16.msra.mxu0 0
  %444 = vmatprep.subr.bf16.mxu0 0
  %445 = vmatpush2.bf16.msra.mxu0 0
  %446 = vmatprep.subr.bf16.mxu0 0
  %447 = vmatpush2.bf16.msra.mxu0 0
  %448 = vmatprep.subr.bf16.mxu0 0
  %449 = vmatpush2.bf16.msra.mxu0 0
  %450 = vmatprep.mubr.bf16.mxu0 0
  %451 = vmatmul.mubr.bf16.gmra.mxu0 %v178
  %v452 = vpop.f32.mrf.mxu0
  %v453 = vadd.f32 0.0, %v452
  %v454 = vpop.f32.mrf.mxu0
  %v455 = vpop.f32.mrf.mxu0
  %v456 = vadd.f32 0.0, %v455
  %v457 = vpop.f32.mrf.mxu0
  %458 = vmatprep.mubr.bf16.mxu0 0
  %459 = vmatmul.mubr.bf16.gmra.mxu0 %v181
  %v460 = vpop.f32.mrf.mxu0
  %v461 = vadd.f32 0.0, %v460
  %v462 = vpop.f32.mrf.mxu0
  %v463 = vpop.f32.mrf.mxu0
  %v464 = vadd.f32 0.0, %v463
  %v465 = vpop.f32.mrf.mxu0
  %466 = vmatprep.mubr.bf16.mxu0 0
  %467 = vmatmul.mubr.bf16.gmra.mxu0 %v184
  %v468 = vpop.f32.mrf.mxu0
  %v469 = vadd.f32 0.0, %v468
  %v470 = vpop.f32.mrf.mxu0
  %v471 = vpop.f32.mrf.mxu0
  %v472 = vadd.f32 0.0, %v471
  %v473 = vpop.f32.mrf.mxu0
  %474 = vmatprep.mubr.bf16.mxu0 0
  %475 = vmatmul.mubr.bf16.gmra.mxu0 %v187
  %v476 = vpop.f32.mrf.mxu0
  %v477 = vadd.f32 0.0, %v476
  %v478 = vpop.f32.mrf.mxu0
  %v479 = vpop.f32.mrf.mxu0
  %v480 = vadd.f32 0.0, %v479
  %v481 = vpop.f32.mrf.mxu0
  %482 = vmatprep.mubr.bf16.mxu0 0
  %483 = vmatmul.mubr.bf16.gmra.mxu0 %v190
  %v484 = vpop.f32.mrf.mxu0
  %v485 = vadd.f32 0.0, %v484
  %v486 = vpop.f32.mrf.mxu0
  %v487 = vpop.f32.mrf.mxu0
  %v488 = vadd.f32 0.0, %v487
  %v489 = vpop.f32.mrf.mxu0
  %490 = vmatprep.mubr.bf16.mxu0 0
  %491 = vmatmul.mubr.bf16.gmra.mxu0 %v193
  %v492 = vpop.f32.mrf.mxu0
  %v493 = vadd.f32 0.0, %v492
  %v494 = vpop.f32.mrf.mxu0
  %v495 = vpop.f32.mrf.mxu0
  %v496 = vadd.f32 0.0, %v495
  %v497 = vpop.f32.mrf.mxu0
  %498 = vmatprep.mubr.bf16.mxu0 0
  %499 = vmatmul.mubr.bf16.gmra.mxu0 %v196
  %v500 = vpop.f32.mrf.mxu0
  %v501 = vadd.f32 0.0, %v500
  %v502 = vpop.f32.mrf.mxu0
  %v503 = vpop.f32.mrf.mxu0
  %v504 = vadd.f32 0.0, %v503
  %v505 = vpop.f32.mrf.mxu0
  %506 = vmatprep.mubr.bf16.mxu0 0
  %507 = vmatmul.mubr.bf16.gmra.mxu0 %v199
  %v508 = vpop.f32.mrf.mxu0
  %v509 = vadd.f32 0.0, %v508
  %v510 = vpop.f32.mrf.mxu0
  %v511 = vpop.f32.mrf.mxu0
  %v512 = vadd.f32 0.0, %v511
  %v513 = vpop.f32.mrf.mxu0
  %514 = vmatprep.mubr.bf16.mxu0 0
  %515 = vmatmul.mubr.bf16.gmra.mxu0 %v202
  %v516 = vpop.f32.mrf.mxu0
  %v517 = vadd.f32 0.0, %v516
  %v518 = vpop.f32.mrf.mxu0
  %v519 = vpop.f32.mrf.mxu0
  %v520 = vadd.f32 0.0, %v519
  %v521 = vpop.f32.mrf.mxu0
  %522 = vmatprep.mubr.bf16.mxu0 0
  %523 = vmatmul.mubr.bf16.gmra.mxu0 %v205
  %v524 = vpop.f32.mrf.mxu0
  %v525 = vadd.f32 0.0, %v524
  %v526 = vpop.f32.mrf.mxu0
  %v527 = vpop.f32.mrf.mxu0
  %v528 = vadd.f32 0.0, %v527
  %v529 = vpop.f32.mrf.mxu0
  %530 = vmatprep.mubr.bf16.mxu0 0
  %531 = vmatmul.mubr.bf16.gmra.mxu0 %v208
  %v532 = vpop.f32.mrf.mxu0
  %v533 = vadd.f32 0.0, %v532
  %v534 = vpop.f32.mrf.mxu0
  %v535 = vpop.f32.mrf.mxu0
  %v536 = vadd.f32 0.0, %v535
  %v537 = vpop.f32.mrf.mxu0
  %538 = vmatprep.mubr.bf16.mxu0 0
  %539 = vmatmul.mubr.bf16.gmra.mxu0 %v211
  %v540 = vpop.f32.mrf.mxu0
  %v541 = vadd.f32 0.0, %v540
  %v542 = vpop.f32.mrf.mxu0
  %v543 = vpop.f32.mrf.mxu0
  %v544 = vadd.f32 0.0, %v543
  %v545 = vpop.f32.mrf.mxu0
  %546 = vmatprep.mubr.bf16.mxu0 0
  %547 = vmatmul.mubr.bf16.gmra.mxu0 %v214
  %v548 = vpop.f32.mrf.mxu0
  %v549 = vadd.f32 0.0, %v548
  %v550 = vpop.f32.mrf.mxu0
  %v551 = vpop.f32.mrf.mxu0
  %v552 = vadd.f32 0.0, %v551
  %v553 = vpop.f32.mrf.mxu0
  %554 = vmatprep.mubr.bf16.mxu0 0
  %555 = vmatmul.mubr.bf16.gmra.mxu0 %v217
  %v556 = vpop.f32.mrf.mxu0
  %v557 = vadd.f32 0.0, %v556
  %v558 = vpop.f32.mrf.mxu0
  %v559 = vpop.f32.mrf.mxu0
  %v560 = vadd.f32 0.0, %v559
  %v561 = vpop.f32.mrf.mxu0
  %562 = vmatprep.mubr.bf16.mxu0 0
  %563 = vmatmul.mubr.bf16.gmra.mxu0 %v220
  %v564 = vpop.f32.mrf.mxu0
  %v565 = vadd.f32 0.0, %v564
  %v566 = vpop.f32.mrf.mxu0
  %v567 = vpop.f32.mrf.mxu0
  %v568 = vadd.f32 0.0, %v567
  %v569 = vpop.f32.mrf.mxu0
  %570 = vmatprep.mubr.bf16.mxu0 0
  %571 = vmatmul.mubr.bf16.gmra.mxu0 %v223
  %v572 = vpop.f32.mrf.mxu0
  %v573 = vadd.f32 0.0, %v572
  %v574 = vpop.f32.mrf.mxu0
  %v575 = vpop.f32.mrf.mxu0
  %v576 = vadd.f32 0.0, %v575
  %v577 = vpop.f32.mrf.mxu0
  %578 = vdwg.mxu0
  %579 = vst [vmem:[#allocation2] sm:$0xff] %v260
  %580 = vst [vmem:[#allocation2 + $0x8] sm:$0xff] %v262
  %581 = vst [vmem:[#allocation2 + $0x10] sm:$0xff] %v453
  %582 = vst [vmem:[#allocation2 + $0x18] sm:$0xff] %v264
  %583 = vst [vmem:[#allocation2 + $0x20] sm:$0xff] %v266
  %584 = vst [vmem:[#allocation2 + $0x28] sm:$0xff] %v456
  %585 = vst [vmem:[#allocation2 + $0x30] sm:$0xff] %v270
  %586 = vst [vmem:[#allocation2 + $0x38] sm:$0xff] %v272
  %587 = vst [vmem:[#allocation2 + $0x40] sm:$0xff] %v461
  %588 = vst [vmem:[#allocation2 + $0x48] sm:$0xff] %v274
  %589 = vst [vmem:[#allocation2 + $0x50] sm:$0xff] %v276
  %590 = vst [vmem:[#allocation2 + $0x58] sm:$0xff] %v464
  %591 = vst [vmem:[#allocation2 + $0x60] sm:$0xff] %v280
  %592 = vst [vmem:[#allocation2 + $0x68] sm:$0xff] %v282
  %593 = vst [vmem:[#allocation2 + $0x70] sm:$0xff] %v469
  %594 = vst [vmem:[#allocation2 + $0x78] sm:$0xff] %v284
  %595 = vst [vmem:[#allocation2 + $0x80] sm:$0xff] %v286
  %596 = vst [vmem:[#allocation2 + $0x88] sm:$0xff] %v472
  %597 = vst [vmem:[#allocation2 + $0x90] sm:$0xff] %v290
  %598 = vst [vmem:[#allocation2 + $0x98] sm:$0xff] %v292
  %599 = vst [vmem:[#allocation2 + $0xa0] sm:$0xff] %v477
  %600 = vst [vmem:[#allocation2 + $0xa8] sm:$0xff] %v294
  %601 = vst [vmem:[#allocation2 + $0xb0] sm:$0xff] %v296
  %602 = vst [vmem:[#allocation2 + $0xb8] sm:$0xff] %v480
  %603 = vst [vmem:[#allocation2 + $0xc0] sm:$0xff] %v300
  %604 = vst [vmem:[#allocation2 + $0xc8] sm:$0xff] %v302
  %605 = vst [vmem:[#allocation2 + $0xd0] sm:$0xff] %v485
  %606 = vst [vmem:[#allocation2 + $0xd8] sm:$0xff] %v304
  %607 = vst [vmem:[#allocation2 + $0xe0] sm:$0xff] %v306
  %608 = vst [vmem:[#allocation2 + $0xe8] sm:$0xff] %v488
  %609 = vst [vmem:[#allocation2 + $0xf0] sm:$0xff] %v310
  %610 = vst [vmem:[#allocation2 + $0xf8] sm:$0xff] %v312
  %611 = vst [vmem:[#allocation2 + $0x100] sm:$0xff] %v493
  %612 = vst [vmem:[#allocation2 + $0x108] sm:$0xff] %v314
  %613 = vst [vmem:[#allocation2 + $0x110] sm:$0xff] %v316
  %614 = vst [vmem:[#allocation2 + $0x118] sm:$0xff] %v496
  %615 = vst [vmem:[#allocation2 + $0x120] sm:$0xff] %v320
  %616 = vst [vmem:[#allocation2 + $0x128] sm:$0xff] %v322
  %617 = vst [vmem:[#allocation2 + $0x130] sm:$0xff] %v501
  %618 = vst [vmem:[#allocation2 + $0x138] sm:$0xff] %v324
  %619 = vst [vmem:[#allocation2 + $0x140] sm:$0xff] %v326
  %620 = vst [vmem:[#allocation2 + $0x148] sm:$0xff] %v504
  %621 = vst [vmem:[#allocation2 + $0x150] sm:$0xff] %v330
  %622 = vst [vmem:[#allocation2 + $0x158] sm:$0xff] %v332
  %623 = vst [vmem:[#allocation2 + $0x160] sm:$0xff] %v509
  %624 = vst [vmem:[#allocation2 + $0x168] sm:$0xff] %v334
  %625 = vst [vmem:[#allocation2 + $0x170] sm:$0xff] %v336
  %626 = vst [vmem:[#allocation2 + $0x178] sm:$0xff] %v512
  %627 = vst [vmem:[#allocation2 + $0x180] sm:$0xff] %v340
  %628 = vst [vmem:[#allocation2 + $0x188] sm:$0xff] %v342
  %629 = vst [vmem:[#allocation2 + $0x190] sm:$0xff] %v517
  %630 = vst [vmem:[#allocation2 + $0x198] sm:$0xff] %v344
  %631 = vst [vmem:[#allocation2 + $0x1a0] sm:$0xff] %v346
  %632 = vst [vmem:[#allocation2 + $0x1a8] sm:$0xff] %v520
  %633 = vst [vmem:[#allocation2 + $0x1b0] sm:$0xff] %v350
  %634 = vst [vmem:[#allocation2 + $0x1b8] sm:$0xff] %v352
  %635 = vst [vmem:[#allocation2 + $0x1c0] sm:$0xff] %v525
  %636 = vst [vmem:[#allocation2 + $0x1c8] sm:$0xff] %v354
  %637 = vst [vmem:[#allocation2 + $0x1d0] sm:$0xff] %v356
  %638 = vst [vmem:[#allocation2 + $0x1d8] sm:$0xff] %v528
  %639 = vst [vmem:[#allocation2 + $0x1e0] sm:$0xff] %v360
  %640 = vst [vmem:[#allocation2 + $0x1e8] sm:$0xff] %v362
  %641 = vst [vmem:[#allocation2 + $0x1f0] sm:$0xff] %v533
  %642 = vst [vmem:[#allocation2 + $0x1f8] sm:$0xff] %v364
  %643 = vst [vmem:[#allocation2 + $0x200] sm:$0xff] %v366
  %644 = vst [vmem:[#allocation2 + $0x208] sm:$0xff] %v536
  %645 = vst [vmem:[#allocation2 + $0x210] sm:$0xff] %v370
  %646 = vst [vmem:[#allocation2 + $0x218] sm:$0xff] %v372
  %647 = vst [vmem:[#allocation2 + $0x220] sm:$0xff] %v541
  %648 = vst [vmem:[#allocation2 + $0x228] sm:$0xff] %v374
  %649 = vst [vmem:[#allocation2 + $0x230] sm:$0xff] %v376
  %650 = vst [vmem:[#allocation2 + $0x238] sm:$0xff] %v544
  %651 = vst [vmem:[#allocation2 + $0x240] sm:$0xff] %v380
  %652 = vst [vmem:[#allocation2 + $0x248] sm:$0xff] %v382
  %653 = vst [vmem:[#allocation2 + $0x250] sm:$0xff] %v549
  %654 = vst [vmem:[#allocation2 + $0x258] sm:$0xff] %v384
  %655 = vst [vmem:[#allocation2 + $0x260] sm:$0xff] %v386
  %656 = vst [vmem:[#allocation2 + $0x268] sm:$0xff] %v552
  %657 = vst [vmem:[#allocation2 + $0x270] sm:$0xff] %v390
  %658 = vst [vmem:[#allocation2 + $0x278] sm:$0xff] %v392
  %659 = vst [vmem:[#allocation2 + $0x280] sm:$0xff] %v557
  %660 = vst [vmem:[#allocation2 + $0x288] sm:$0xff] %v394
  %661 = vst [vmem:[#allocation2 + $0x290] sm:$0xff] %v396
  %662 = vst [vmem:[#allocation2 + $0x298] sm:$0xff] %v560
  %663 = vst [vmem:[#allocation2 + $0x2a0] sm:$0xff] %v400
  %664 = vst [vmem:[#allocation2 + $0x2a8] sm:$0xff] %v402
  %665 = vst [vmem:[#allocation2 + $0x2b0] sm:$0xff] %v565
  %666 = vst [vmem:[#allocation2 + $0x2b8] sm:$0xff] %v404
  %667 = vst [vmem:[#allocation2 + $0x2c0] sm:$0xff] %v406
  %668 = vst [vmem:[#allocation2 + $0x2c8] sm:$0xff] %v568
  %669 = vst [vmem:[#allocation2 + $0x2d0] sm:$0xff] %v410
  %670 = vst [vmem:[#allocation2 + $0x2d8] sm:$0xff] %v412
  %671 = vst [vmem:[#allocation2 + $0x2e0] sm:$0xff] %v573
  %672 = vst [vmem:[#allocation2 + $0x2e8] sm:$0xff] %v414
  %673 = vst [vmem:[#allocation2 + $0x2f0] sm:$0xff] %v416
  %674 = vst [vmem:[#allocation2 + $0x2f8] sm:$0xff] %v576
  %v675 = vld [vmem:[%s3] sm:$0x1]
  %v676 = vld [vmem:[%s4] sm:$0x1]
  %v677 = vld [vmem:[%s2] sm:$0xf]
  %v678 = vld [vmem:[%s2 + $0x4] sm:$0xf]
  %v679 = vld [vmem:[%s2 + $0x8] sm:$0xf]
  %v680 = vld [vmem:[%s2 + $0xc] sm:$0xf]
  %v681 = vld [vmem:[%s2 + $0x10] sm:$0xf]
  %v682 = vld [vmem:[%s2 + $0x14] sm:$0xf]
  %v683 = vld [vmem:[%s2 + $0x18] sm:$0xf]
  %v684 = vld [vmem:[%s2 + $0x1c] sm:$0xf]
  %v685 = vld [vmem:[%s2 + $0x20] sm:$0xf]
  %v686 = vld [vmem:[%s2 + $0x24] sm:$0xf]
  %v687 = vld [vmem:[%s2 + $0x28] sm:$0xf]
  %v688 = vld [vmem:[%s2 + $0x2c] sm:$0xf]
  %v689 = vld [vmem:[%s2 + $0x30] sm:$0xf]
  %v690 = vld [vmem:[%s2 + $0x34] sm:$0xf]
  %v691 = vld [vmem:[%s2 + $0x38] sm:$0xf]
  %v692 = vld [vmem:[%s2 + $0x3c] sm:$0xf]
  %v693 = vld [vmem:[%s5] sm:$0x1]
  %s694 = smul.u32 0, 3
  %s695 = smul.addr %s694, 8
  %s696 = scalar_lea.vmem [#allocation2], %s695
  %v697 = vld [vmem:[%s696] sm:$0xff]
  %v698 = vld [vmem:[%s696 + $0x18] sm:$0xff]
  %v699 = vld [vmem:[%s696 + $0x30] sm:$0xff]
  %v700 = vld [vmem:[%s696 + $0x48] sm:$0xff]
  %v701 = vld [vmem:[%s696 + $0x60] sm:$0xff]
  %v702 = vld [vmem:[%s696 + $0x78] sm:$0xff]
  %v703 = vld [vmem:[%s696 + $0x90] sm:$0xff]
  %v704 = vld [vmem:[%s696 + $0xa8] sm:$0xff]
  %v705 = vld [vmem:[%s696 + $0x8] sm:$0xff]
  %v706 = vld [vmem:[%s696 + $0x20] sm:$0xff]
  %v707 = vld [vmem:[%s696 + $0x38] sm:$0xff]
  %v708 = vld [vmem:[%s696 + $0x50] sm:$0xff]
  %v709 = vld [vmem:[%s696 + $0x68] sm:$0xff]
  %v710 = vld [vmem:[%s696 + $0x80] sm:$0xff]
  %v711 = vld [vmem:[%s696 + $0x98] sm:$0xff]
  %v712 = vld [vmem:[%s696 + $0xb0] sm:$0xff]
  %v713 = vld [vmem:[%s696 + $0x10] sm:$0xff]
  %v714 = vld [vmem:[%s696 + $0x28] sm:$0xff]
  %v715 = vld [vmem:[%s696 + $0x40] sm:$0xff]
  %v716 = vld [vmem:[%s696 + $0x58] sm:$0xff]
  %v717 = vld [vmem:[%s696 + $0x70] sm:$0xff]
  %v718 = vld [vmem:[%s696 + $0x88] sm:$0xff]
  %v719 = vld [vmem:[%s696 + $0xa0] sm:$0xff]
  %v720 = vld [vmem:[%s696 + $0xb8] sm:$0xff]
  %v722 = vlaneseq
  %v723 = vshrl.u32 %v722, 7
  %v724 = vsub.s32 0, %v723
  %v725 = vrot.slane %v675, %v724
  %v727 = vmul.f32 %v697, %v725
  %v728 = vmul.f32 %v698, %v725
  %v729 = vmul.f32 %v699, %v725
  %v730 = vmul.f32 %v700, %v725
  %v731 = vmul.f32 %v701, %v725
  %v732 = vmul.f32 %v702, %v725
  %v733 = vmul.f32 %v703, %v725
  %v734 = vmul.f32 %v704, %v725
  %v736 = vlaneseq
  %v737 = vshrl.u32 %v736, 7
  %v738 = vsub.s32 0, %v737
  %v739 = vrot.slane %v693, %v738
  %v741 = vadd.f32 %v727, %v739
  %v742 = vadd.f32 %v728, %v739
  %v743 = vadd.f32 %v729, %v739
  %v744 = vadd.f32 %v730, %v739
  %v745 = vadd.f32 %v731, %v739
  %v746 = vadd.f32 %v732, %v739
  %v747 = vadd.f32 %v733, %v739
  %v748 = vadd.f32 %v734, %v739
  %749 = vmax.xlane.f32.xlu0 %v741
  %v750 = vpop.xlane.xlu0 %749
  %751 = vmax.xlane.f32.xlu0 %v742
  %v752 = vpop.xlane.xlu0 %751
  %753 = vmax.xlane.f32.xlu0 %v743
  %v754 = vpop.xlane.xlu0 %753
  %755 = vmax.xlane.f32.xlu0 %v744
  %v756 = vpop.xlane.xlu0 %755
  %757 = vmax.xlane.f32.xlu0 %v745
  %v758 = vpop.xlane.xlu0 %757
  %759 = vmax.xlane.f32.xlu0 %v746
  %v760 = vpop.xlane.xlu0 %759
  %761 = vmax.xlane.f32.xlu0 %v747
  %v762 = vpop.xlane.xlu0 %761
  %763 = vmax.xlane.f32.xlu0 %v748
  %v764 = vpop.xlane.xlu0 %763
  %v765 = vsub.f32 %v741, %v750
  %v766 = vsub.f32 %v742, %v752
  %v767 = vsub.f32 %v743, %v754
  %v768 = vsub.f32 %v744, %v756
  %v769 = vsub.f32 %v745, %v758
  %v770 = vsub.f32 %v746, %v760
  %v771 = vsub.f32 %v747, %v762
  %v772 = vsub.f32 %v748, %v764
  %v773 = vmul.f32 %v765, 1.442695
  %v774 = vpow.pop %v773
  %v775 = vmul.f32 %v766, 1.442695
  %v776 = vpow.pop %v775
  %v777 = vmul.f32 %v767, 1.442695
  %v778 = vpow.pop %v777
  %v779 = vmul.f32 %v768, 1.442695
  %v780 = vpow.pop %v779
  %v781 = vmul.f32 %v769, 1.442695
  %v782 = vpow.pop %v781
  %v783 = vmul.f32 %v770, 1.442695
  %v784 = vpow.pop %v783
  %v785 = vmul.f32 %v771, 1.442695
  %v786 = vpow.pop %v785
  %v787 = vmul.f32 %v772, 1.442695
  %v788 = vpow.pop %v787
  %789 = vadd.xlane.f32.xlu0 %v774
  %v790 = vpop.xlane.xlu0 %789
  %791 = vadd.xlane.f32.xlu0 %v776
  %v792 = vpop.xlane.xlu0 %791
  %793 = vadd.xlane.f32.xlu0 %v778
  %v794 = vpop.xlane.xlu0 %793
  %795 = vadd.xlane.f32.xlu0 %v780
  %v796 = vpop.xlane.xlu0 %795
  %797 = vadd.xlane.f32.xlu0 %v782
  %v798 = vpop.xlane.xlu0 %797
  %799 = vadd.xlane.f32.xlu0 %v784
  %v800 = vpop.xlane.xlu0 %799
  %801 = vadd.xlane.f32.xlu0 %v786
  %v802 = vpop.xlane.xlu0 %801
  %803 = vadd.xlane.f32.xlu0 %v788
  %v804 = vpop.xlane.xlu0 %803
  %v805 = vrcp.pop %v790
  %v806 = vrcp.pop %v792
  %v807 = vrcp.pop %v794
  %v808 = vrcp.pop %v796
  %v809 = vrcp.pop %v798
  %v810 = vrcp.pop %v800
  %v811 = vrcp.pop %v802
  %v812 = vrcp.pop %v804
  %v813 = vmul.f32 %v774, %v805
  %v814 = vmul.f32 %v776, %v806
  %v815 = vmul.f32 %v778, %v807
  %v816 = vmul.f32 %v780, %v808
  %v817 = vmul.f32 %v782, %v809
  %v818 = vmul.f32 %v784, %v810
  %v819 = vmul.f32 %v786, %v811
  %v820 = vmul.f32 %v788, %v812
  %v821 = vmul.f32 %v697, %v813
  %v822 = vmul.f32 %v698, %v814
  %v823 = vmul.f32 %v699, %v815
  %v824 = vmul.f32 %v700, %v816
  %v825 = vmul.f32 %v701, %v817
  %v826 = vmul.f32 %v702, %v818
  %v827 = vmul.f32 %v703, %v819
  %v828 = vmul.f32 %v704, %v820
  %v829 = vrot.slane %v821, 4
  %v830 = vadd.f32 %v821, %v829
  %v831 = vrot.slane %v830, 2
  %v832 = vadd.f32 %v830, %v831
  %v833 = vrot.slane %v832, 1
  %v834 = vadd.f32 %v832, %v833
  %v835 = vrot.slane %v822, 4
  %v836 = vadd.f32 %v822, %v835
  %v837 = vrot.slane %v836, 2
  %v838 = vadd.f32 %v836, %v837
  %v839 = vrot.slane %v838, 1
  %v840 = vadd.f32 %v838, %v839
  %v841 = vrot.slane %v823, 4
  %v842 = vadd.f32 %v823, %v841
  %v843 = vrot.slane %v842, 2
  %v844 = vadd.f32 %v842, %v843
  %v845 = vrot.slane %v844, 1
  %v846 = vadd.f32 %v844, %v845
  %v847 = vrot.slane %v824, 4
  %v848 = vadd.f32 %v824, %v847
  %v849 = vrot.slane %v848, 2
  %v850 = vadd.f32 %v848, %v849
  %v851 = vrot.slane %v850, 1
  %v852 = vadd.f32 %v850, %v851
  %v853 = vrot.slane %v825, 4
  %v854 = vadd.f32 %v825, %v853
  %v855 = vrot.slane %v854, 2
  %v856 = vadd.f32 %v854, %v855
  %v857 = vrot.slane %v856, 1
  %v858 = vadd.f32 %v856, %v857
  %v859 = vrot.slane %v826, 4
  %v860 = vadd.f32 %v826, %v859
  %v861 = vrot.slane %v860, 2
  %v862 = vadd.f32 %v860, %v861
  %v863 = vrot.slane %v862, 1
  %v864 = vadd.f32 %v862, %v863
  %v865 = vrot.slane %v827, 4
  %v866 = vadd.f32 %v827, %v865
  %v867 = vrot.slane %v866, 2
  %v868 = vadd.f32 %v866, %v867
  %v869 = vrot.slane %v868, 1
  %v870 = vadd.f32 %v868, %v869
  %v871 = vrot.slane %v828, 4
  %v872 = vadd.f32 %v828, %v871
  %v873 = vrot.slane %v872, 2
  %v874 = vadd.f32 %v872, %v873
  %v875 = vrot.slane %v874, 1
  %v876 = vadd.f32 %v874, %v875
  %v877 = vmul.f32 %v834, %v705
  %v878 = vmul.f32 %v840, %v706
  %v879 = vmul.f32 %v846, %v707
  %v880 = vmul.f32 %v852, %v708
  %v881 = vmul.f32 %v858, %v709
  %v882 = vmul.f32 %v864, %v710
  %v883 = vmul.f32 %v870, %v711
  %v884 = vmul.f32 %v876, %v712
  %v886 = vlaneseq
  %v887 = vshrl.u32 %v886, 7
  %v888 = vsub.s32 0, %v887
  %v889 = vrot.slane %v676, %v888
  %v891 = vmul.f32 %v877, %v889
  %v892 = vmul.f32 %v878, %v889
  %v893 = vmul.f32 %v879, %v889
  %v894 = vmul.f32 %v880, %v889
  %v895 = vmul.f32 %v881, %v889
  %v896 = vmul.f32 %v882, %v889
  %v897 = vmul.f32 %v883, %v889
  %v898 = vmul.f32 %v884, %v889
  %v899 = vadd.f32 %v891, %v739
  %v900 = vadd.f32 %v892, %v739
  %v901 = vadd.f32 %v893, %v739
  %v902 = vadd.f32 %v894, %v739
  %v903 = vadd.f32 %v895, %v739
  %v904 = vadd.f32 %v896, %v739
  %v905 = vadd.f32 %v897, %v739
  %v906 = vadd.f32 %v898, %v739
  %907 = vmax.xlane.f32.xlu0 %v899
  %v908 = vpop.xlane.xlu0 %907
  %909 = vmax.xlane.f32.xlu0 %v900
  %v910 = vpop.xlane.xlu0 %909
  %911 = vmax.xlane.f32.xlu0 %v901
  %v912 = vpop.xlane.xlu0 %911
  %913 = vmax.xlane.f32.xlu0 %v902
  %v914 = vpop.xlane.xlu0 %913
  %915 = vmax.xlane.f32.xlu0 %v903
  %v916 = vpop.xlane.xlu0 %915
  %917 = vmax.xlane.f32.xlu0 %v904
  %v918 = vpop.xlane.xlu0 %917
  %919 = vmax.xlane.f32.xlu0 %v905
  %v920 = vpop.xlane.xlu0 %919
  %921 = vmax.xlane.f32.xlu0 %v906
  %v922 = vpop.xlane.xlu0 %921
  %v923 = vsub.f32 %v899, %v908
  %v924 = vsub.f32 %v900, %v910
  %v925 = vsub.f32 %v901, %v912
  %v926 = vsub.f32 %v902, %v914
  %v927 = vsub.f32 %v903, %v916
  %v928 = vsub.f32 %v904, %v918
  %v929 = vsub.f32 %v905, %v920
  %v930 = vsub.f32 %v906, %v922
  %v931 = vmul.f32 %v923, 1.442695
  %v932 = vpow.pop %v931
  %v933 = vmul.f32 %v924, 1.442695
  %v934 = vpow.pop %v933
  %v935 = vmul.f32 %v925, 1.442695
  %v936 = vpow.pop %v935
  %v937 = vmul.f32 %v926, 1.442695
  %v938 = vpow.pop %v937
  %v939 = vmul.f32 %v927, 1.442695
  %v940 = vpow.pop %v939
  %v941 = vmul.f32 %v928, 1.442695
  %v942 = vpow.pop %v941
  %v943 = vmul.f32 %v929, 1.442695
  %v944 = vpow.pop %v943
  %v945 = vmul.f32 %v930, 1.442695
  %v946 = vpow.pop %v945
  %947 = vadd.xlane.f32.xlu0 %v932
  %v948 = vpop.xlane.xlu0 %947
  %949 = vadd.xlane.f32.xlu0 %v934
  %v950 = vpop.xlane.xlu0 %949
  %951 = vadd.xlane.f32.xlu0 %v936
  %v952 = vpop.xlane.xlu0 %951
  %953 = vadd.xlane.f32.xlu0 %v938
  %v954 = vpop.xlane.xlu0 %953
  %955 = vadd.xlane.f32.xlu0 %v940
  %v956 = vpop.xlane.xlu0 %955
  %957 = vadd.xlane.f32.xlu0 %v942
  %v958 = vpop.xlane.xlu0 %957
  %959 = vadd.xlane.f32.xlu0 %v944
  %v960 = vpop.xlane.xlu0 %959
  %961 = vadd.xlane.f32.xlu0 %v946
  %v962 = vpop.xlane.xlu0 %961
  %v963 = vrcp.pop %v948
  %v964 = vrcp.pop %v950
  %v965 = vrcp.pop %v952
  %v966 = vrcp.pop %v954
  %v967 = vrcp.pop %v956
  %v968 = vrcp.pop %v958
  %v969 = vrcp.pop %v960
  %v970 = vrcp.pop %v962
  %v971 = vmul.f32 %v932, %v963
  %v972 = vmul.f32 %v934, %v964
  %v973 = vmul.f32 %v936, %v965
  %v974 = vmul.f32 %v938, %v966
  %v975 = vmul.f32 %v940, %v967
  %v976 = vmul.f32 %v942, %v968
  %v977 = vmul.f32 %v944, %v969
  %v978 = vmul.f32 %v946, %v970
  %v979 = vmul.f32 %v877, %v971
  %v980 = vmul.f32 %v878, %v972
  %v981 = vmul.f32 %v879, %v973
  %v982 = vmul.f32 %v880, %v974
  %v983 = vmul.f32 %v881, %v975
  %v984 = vmul.f32 %v882, %v976
  %v985 = vmul.f32 %v883, %v977
  %v986 = vmul.f32 %v884, %v978
  %v987 = vrot.slane %v979, 4
  %v988 = vadd.f32 %v979, %v987
  %v989 = vrot.slane %v988, 2
  %v990 = vadd.f32 %v988, %v989
  %v991 = vrot.slane %v990, 1
  %v992 = vadd.f32 %v990, %v991
  %v993 = vrot.slane %v980, 4
  %v994 = vadd.f32 %v980, %v993
  %v995 = vrot.slane %v994, 2
  %v996 = vadd.f32 %v994, %v995
  %v997 = vrot.slane %v996, 1
  %v998 = vadd.f32 %v996, %v997
  %v999 = vrot.slane %v981, 4
  %v1000 = vadd.f32 %v981, %v999
  %v1001 = vrot.slane %v1000, 2
  %v1002 = vadd.f32 %v1000, %v1001
  %v1003 = vrot.slane %v1002, 1
  %v1004 = vadd.f32 %v1002, %v1003
  %v1005 = vrot.slane %v982, 4
  %v1006 = vadd.f32 %v982, %v1005
  %v1007 = vrot.slane %v1006, 2
  %v1008 = vadd.f32 %v1006, %v1007
  %v1009 = vrot.slane %v1008, 1
  %v1010 = vadd.f32 %v1008, %v1009
  %v1011 = vrot.slane %v983, 4
  %v1012 = vadd.f32 %v983, %v1011
  %v1013 = vrot.slane %v1012, 2
  %v1014 = vadd.f32 %v1012, %v1013
  %v1015 = vrot.slane %v1014, 1
  %v1016 = vadd.f32 %v1014, %v1015
  %v1017 = vrot.slane %v984, 4
  %v1018 = vadd.f32 %v984, %v1017
  %v1019 = vrot.slane %v1018, 2
  %v1020 = vadd.f32 %v1018, %v1019
  %v1021 = vrot.slane %v1020, 1
  %v1022 = vadd.f32 %v1020, %v1021
  %v1023 = vrot.slane %v985, 4
  %v1024 = vadd.f32 %v985, %v1023
  %v1025 = vrot.slane %v1024, 2
  %v1026 = vadd.f32 %v1024, %v1025
  %v1027 = vrot.slane %v1026, 1
  %v1028 = vadd.f32 %v1026, %v1027
  %v1029 = vrot.slane %v986, 4
  %v1030 = vadd.f32 %v986, %v1029
  %v1031 = vrot.slane %v1030, 2
  %v1032 = vadd.f32 %v1030, %v1031
  %v1033 = vrot.slane %v1032, 1
  %v1034 = vadd.f32 %v1032, %v1033
  %v1035 = vmul.f32 %v992, %v713
  %v1036 = vmul.f32 %v998, %v714
  %v1037 = vmul.f32 %v1004, %v715
  %v1038 = vmul.f32 %v1010, %v716
  %v1039 = vmul.f32 %v1016, %v717
  %v1040 = vmul.f32 %v1022, %v718
  %v1041 = vmul.f32 %v1028, %v719
  %v1042 = vmul.f32 %v1034, %v720
  %v1043 = vpack.c.bf16 %v1036, %v1035
  %v1044 = vpack.c.bf16 %v1038, %v1037
  %v1045 = vpack.c.bf16 %v1040, %v1039
  %v1046 = vpack.c.bf16 %v1042, %v1041
  %v1063 = vunpack.c.l.b16 %v677
  %v1064 = vunpack.c.l.b16 %v678
  %v1065 = vunpack.c.l.b16 %v679
  %v1066 = vunpack.c.l.b16 %v680
  %v1067 = vunpack.c.l.b16 %v681
  %v1068 = vunpack.c.l.b16 %v682
  %v1069 = vunpack.c.l.b16 %v683
  %v1070 = vunpack.c.l.b16 %v684
  %v1071 = vunpack.c.l.b16 %v685
  %v1072 = vunpack.c.l.b16 %v686
  %v1073 = vunpack.c.l.b16 %v687
  %v1074 = vunpack.c.l.b16 %v688
  %v1075 = vunpack.c.l.b16 %v689
  %v1076 = vunpack.c.l.b16 %v690
  %v1077 = vunpack.c.l.b16 %v691
  %v1078 = vunpack.c.l.b16 %v692
  %v1079 = vpack.c.b16 %v1064, %v1063
  %v1080 = vpack.c.b16 %v1066, %v1065
  %v1081 = vpack.c.b16 %v1068, %v1067
  %v1082 = vpack.c.b16 %v1070, %v1069
  %v1083 = vpack.c.b16 %v1072, %v1071
  %v1084 = vpack.c.b16 %v1074, %v1073
  %v1085 = vpack.c.b16 %v1076, %v1075
  %v1086 = vpack.c.b16 %v1078, %v1077
  %1095 = vmatprep.subr.bf16.mxu0 0
  %1096 = vmatpush1.bf16.msra.mxu0 %v1086
  %1097 = vmatprep.subr.bf16.mxu0 0
  %1098 = vmatpush1.bf16.msra.mxu0 %v1085
  %1099 = vmatprep.subr.bf16.mxu0 0
  %1100 = vmatpush1.bf16.msra.mxu0 %v1084
  %1101 = vmatprep.subr.bf16.mxu0 0
  %1102 = vmatpush1.bf16.msra.mxu0 %v1083
  %1103 = vmatprep.subr.bf16.mxu0 0
  %1104 = vmatpush1.bf16.msra.mxu0 %v1082
  %1105 = vmatprep.subr.bf16.mxu0 0
  %1106 = vmatpush1.bf16.msra.mxu0 %v1081
  %1107 = vmatprep.subr.bf16.mxu0 0
  %1108 = vmatpush1.bf16.msra.mxu0 %v1080
  %1109 = vmatprep.subr.bf16.mxu0 0
  %1110 = vmatpush1.bf16.msra.mxu0 %v1079
  %1111 = vmatprep.subr.bf16.mxu0 0
  %1112 = vmatpush2.bf16.msra.mxu0 0
  %1113 = vmatprep.subr.bf16.mxu0 0
  %1114 = vmatpush2.bf16.msra.mxu0 0
  %1115 = vmatprep.subr.bf16.mxu0 0
  %1116 = vmatpush2.bf16.msra.mxu0 0
  %1117 = vmatprep.subr.bf16.mxu0 0
  %1118 = vmatpush2.bf16.msra.mxu0 0
  %1119 = vmatprep.subr.bf16.mxu0 0
  %1120 = vmatpush2.bf16.msra.mxu0 0
  %1121 = vmatprep.subr.bf16.mxu0 0
  %1122 = vmatpush2.bf16.msra.mxu0 0
  %1123 = vmatprep.subr.bf16.mxu0 0
  %1124 = vmatpush2.bf16.msra.mxu0 0
  %1125 = vmatprep.subr.bf16.mxu0 0
  %1126 = vmatpush2.bf16.msra.mxu0 0
  %1127 = vmatprep.mubr.bf16.mxu0 0
  %1128 = vmatmul.mubr.bf16.gmra.mxu0 %v1043
  %v1129 = vpop.f32.mrf.mxu0
  %v1130 = vadd.f32 %v697, %v1129
  %v1131 = vpop.f32.mrf.mxu0
  %v1132 = vpop.f32.mrf.mxu0
  %v1133 = vadd.f32 %v698, %v1132
  %v1134 = vpop.f32.mrf.mxu0
  %1135 = vmatprep.mubr.bf16.mxu0 0
  %1136 = vmatmul.mubr.bf16.gmra.mxu0 %v1044
  %v1137 = vpop.f32.mrf.mxu0
  %v1138 = vadd.f32 %v699, %v1137
  %v1139 = vpop.f32.mrf.mxu0
  %v1140 = vpop.f32.mrf.mxu0
  %v1141 = vadd.f32 %v700, %v1140
  %v1142 = vpop.f32.mrf.mxu0
  %1143 = vmatprep.mubr.bf16.mxu0 0
  %1144 = vmatmul.mubr.bf16.gmra.mxu0 %v1045
  %v1145 = vpop.f32.mrf.mxu0
  %v1146 = vadd.f32 %v701, %v1145
  %v1147 = vpop.f32.mrf.mxu0
  %v1148 = vpop.f32.mrf.mxu0
  %v1149 = vadd.f32 %v702, %v1148
  %v1150 = vpop.f32.mrf.mxu0
  %1151 = vmatprep.mubr.bf16.mxu0 0
  %1152 = vmatmul.mubr.bf16.gmra.mxu0 %v1046
  %v1153 = vpop.f32.mrf.mxu0
  %v1154 = vadd.f32 %v703, %v1153
  %v1155 = vpop.f32.mrf.mxu0
  %v1156 = vpop.f32.mrf.mxu0
  %v1157 = vadd.f32 %v704, %v1156
  %v1158 = vpop.f32.mrf.mxu0
  %1159 = vdwg.mxu0
  %vm1160 = vcmask 130048
  %1161 = vst.msk [vmem:[%s6] sm:$0xff] %vm1160, %v1130
  %1162 = vst.msk [vmem:[%s6 + $0x8] sm:$0xff] %vm1160, %v1133
  %1163 = vst.msk [vmem:[%s6 + $0x10] sm:$0xff] %vm1160, %v1138
  %1164 = vst.msk [vmem:[%s6 + $0x18] sm:$0xff] %vm1160, %v1141
  %1165 = vst.msk [vmem:[%s6 + $0x20] sm:$0xff] %vm1160, %v1146
  %1166 = vst.msk [vmem:[%s6 + $0x28] sm:$0xff] %vm1160, %v1149
  %1167 = vst.msk [vmem:[%s6 + $0x30] sm:$0xff] %vm1160, %v1154
  %1168 = vst.msk [vmem:[%s6 + $0x38] sm:$0xff] %vm1160, %v1157
  %s1169 = smul.u32 8, 3
  %s1170 = smul.addr %s1169, 8
  %s1171 = scalar_lea.vmem [#allocation2], %s1170
  %v1172 = vld [vmem:[%s1171] sm:$0xff]
  %v1173 = vld [vmem:[%s1171 + $0x18] sm:$0xff]
  %v1174 = vld [vmem:[%s1171 + $0x30] sm:$0xff]
  %v1175 = vld [vmem:[%s1171 + $0x48] sm:$0xff]
  %v1176 = vld [vmem:[%s1171 + $0x60] sm:$0xff]
  %v1177 = vld [vmem:[%s1171 + $0x78] sm:$0xff]
  %v1178 = vld [vmem:[%s1171 + $0x90] sm:$0xff]
  %v1179 = vld [vmem:[%s1171 + $0xa8] sm:$0xff]
  %v1180 = vld [vmem:[%s1171 + $0x8] sm:$0xff]
  %v1181 = vld [vmem:[%s1171 + $0x20] sm:$0xff]
  %v1182 = vld [vmem:[%s1171 + $0x38] sm:$0xff]
  %v1183 = vld [vmem:[%s1171 + $0x50] sm:$0xff]
  %v1184 = vld [vmem:[%s1171 + $0x68] sm:$0xff]
  %v1185 = vld [vmem:[%s1171 + $0x80] sm:$0xff]
  %v1186 = vld [vmem:[%s1171 + $0x98] sm:$0xff]
  %v1187 = vld [vmem:[%s1171 + $0xb0] sm:$0xff]
  %v1188 = vld [vmem:[%s1171 + $0x10] sm:$0xff]
  %v1189 = vld [vmem:[%s1171 + $0x28] sm:$0xff]
  %v1190 = vld [vmem:[%s1171 + $0x40] sm:$0xff]
  %v1191 = vld [vmem:[%s1171 + $0x58] sm:$0xff]
  %v1192 = vld [vmem:[%s1171 + $0x70] sm:$0xff]
  %v1193 = vld [vmem:[%s1171 + $0x88] sm:$0xff]
  %v1194 = vld [vmem:[%s1171 + $0xa0] sm:$0xff]
  %v1195 = vld [vmem:[%s1171 + $0xb8] sm:$0xff]
  %v1196 = vmul.f32 %v1172, %v725
  %v1197 = vmul.f32 %v1173, %v725
  %v1198 = vmul.f32 %v1174, %v725
  %v1199 = vmul.f32 %v1175, %v725
  %v1200 = vmul.f32 %v1176, %v725
  %v1201 = vmul.f32 %v1177, %v725
  %v1202 = vmul.f32 %v1178, %v725
  %v1203 = vmul.f32 %v1179, %v725
  %v1204 = vadd.f32 %v1196, %v739
  %v1205 = vadd.f32 %v1197, %v739
  %v1206 = vadd.f32 %v1198, %v739
  %v1207 = vadd.f32 %v1199, %v739
  %v1208 = vadd.f32 %v1200, %v739
  %v1209 = vadd.f32 %v1201, %v739
  %v1210 = vadd.f32 %v1202, %v739
  %v1211 = vadd.f32 %v1203, %v739
  %1212 = vmax.xlane.f32.xlu0 %v1204
  %v1213 = vpop.xlane.xlu0 %1212
  %1214 = vmax.xlane.f32.xlu0 %v1205
  %v1215 = vpop.xlane.xlu0 %1214
  %1216 = vmax.xlane.f32.xlu0 %v1206
  %v1217 = vpop.xlane.xlu0 %1216
  %1218 = vmax.xlane.f32.xlu0 %v1207
  %v1219 = vpop.xlane.xlu0 %1218
  %1220 = vmax.xlane.f32.xlu0 %v1208
  %v1221 = vpop.xlane.xlu0 %1220
  %1222 = vmax.xlane.f32.xlu0 %v1209
  %v1223 = vpop.xlane.xlu0 %1222
  %1224 = vmax.xlane.f32.xlu0 %v1210
  %v1225 = vpop.xlane.xlu0 %1224
  %1226 = vmax.xlane.f32.xlu0 %v1211
  %v1227 = vpop.xlane.xlu0 %1226
  %v1228 = vsub.f32 %v1204, %v1213
  %v1229 = vsub.f32 %v1205, %v1215
  %v1230 = vsub.f32 %v1206, %v1217
  %v1231 = vsub.f32 %v1207, %v1219
  %v1232 = vsub.f32 %v1208, %v1221
  %v1233 = vsub.f32 %v1209, %v1223
  %v1234 = vsub.f32 %v1210, %v1225
  %v1235 = vsub.f32 %v1211, %v1227
  %v1236 = vmul.f32 %v1228, 1.442695
  %v1237 = vpow.pop %v1236
  %v1238 = vmul.f32 %v1229, 1.442695
  %v1239 = vpow.pop %v1238
  %v1240 = vmul.f32 %v1230, 1.442695
  %v1241 = vpow.pop %v1240
  %v1242 = vmul.f32 %v1231, 1.442695
  %v1243 = vpow.pop %v1242
  %v1244 = vmul.f32 %v1232, 1.442695
  %v1245 = vpow.pop %v1244
  %v1246 = vmul.f32 %v1233, 1.442695
  %v1247 = vpow.pop %v1246
  %v1248 = vmul.f32 %v1234, 1.442695
  %v1249 = vpow.pop %v1248
  %v1250 = vmul.f32 %v1235, 1.442695
  %v1251 = vpow.pop %v1250
  %1252 = vadd.xlane.f32.xlu0 %v1237
  %v1253 = vpop.xlane.xlu0 %1252
  %1254 = vadd.xlane.f32.xlu0 %v1239
  %v1255 = vpop.xlane.xlu0 %1254
  %1256 = vadd.xlane.f32.xlu0 %v1241
  %v1257 = vpop.xlane.xlu0 %1256
  %1258 = vadd.xlane.f32.xlu0 %v1243
  %v1259 = vpop.xlane.xlu0 %1258
  %1260 = vadd.xlane.f32.xlu0 %v1245
  %v1261 = vpop.xlane.xlu0 %1260
  %1262 = vadd.xlane.f32.xlu0 %v1247
  %v1263 = vpop.xlane.xlu0 %1262
  %1264 = vadd.xlane.f32.xlu0 %v1249
  %v1265 = vpop.xlane.xlu0 %1264
  %1266 = vadd.xlane.f32.xlu0 %v1251
  %v1267 = vpop.xlane.xlu0 %1266
  %v1268 = vrcp.pop %v1253
  %v1269 = vrcp.pop %v1255
  %v1270 = vrcp.pop %v1257
  %v1271 = vrcp.pop %v1259
  %v1272 = vrcp.pop %v1261
  %v1273 = vrcp.pop %v1263
  %v1274 = vrcp.pop %v1265
  %v1275 = vrcp.pop %v1267
  %v1276 = vmul.f32 %v1237, %v1268
  %v1277 = vmul.f32 %v1239, %v1269
  %v1278 = vmul.f32 %v1241, %v1270
  %v1279 = vmul.f32 %v1243, %v1271
  %v1280 = vmul.f32 %v1245, %v1272
  %v1281 = vmul.f32 %v1247, %v1273
  %v1282 = vmul.f32 %v1249, %v1274
  %v1283 = vmul.f32 %v1251, %v1275
  %v1284 = vmul.f32 %v1172, %v1276
  %v1285 = vmul.f32 %v1173, %v1277
  %v1286 = vmul.f32 %v1174, %v1278
  %v1287 = vmul.f32 %v1175, %v1279
  %v1288 = vmul.f32 %v1176, %v1280
  %v1289 = vmul.f32 %v1177, %v1281
  %v1290 = vmul.f32 %v1178, %v1282
  %v1291 = vmul.f32 %v1179, %v1283
  %v1292 = vrot.slane %v1284, 4
  %v1293 = vadd.f32 %v1284, %v1292
  %v1294 = vrot.slane %v1293, 2
  %v1295 = vadd.f32 %v1293, %v1294
  %v1296 = vrot.slane %v1295, 1
  %v1297 = vadd.f32 %v1295, %v1296
  %v1298 = vrot.slane %v1285, 4
  %v1299 = vadd.f32 %v1285, %v1298
  %v1300 = vrot.slane %v1299, 2
  %v1301 = vadd.f32 %v1299, %v1300
  %v1302 = vrot.slane %v1301, 1
  %v1303 = vadd.f32 %v1301, %v1302
  %v1304 = vrot.slane %v1286, 4
  %v1305 = vadd.f32 %v1286, %v1304
  %v1306 = vrot.slane %v1305, 2
  %v1307 = vadd.f32 %v1305, %v1306
  %v1308 = vrot.slane %v1307, 1
  %v1309 = vadd.f32 %v1307, %v1308
  %v1310 = vrot.slane %v1287, 4
  %v1311 = vadd.f32 %v1287, %v1310
  %v1312 = vrot.slane %v1311, 2
  %v1313 = vadd.f32 %v1311, %v1312
  %v1314 = vrot.slane %v1313, 1
  %v1315 = vadd.f32 %v1313, %v1314
  %v1316 = vrot.slane %v1288, 4
  %v1317 = vadd.f32 %v1288, %v1316
  %v1318 = vrot.slane %v1317, 2
  %v1319 = vadd.f32 %v1317, %v1318
  %v1320 = vrot.slane %v1319, 1
  %v1321 = vadd.f32 %v1319, %v1320
  %v1322 = vrot.slane %v1289, 4
  %v1323 = vadd.f32 %v1289, %v1322
  %v1324 = vrot.slane %v1323, 2
  %v1325 = vadd.f32 %v1323, %v1324
  %v1326 = vrot.slane %v1325, 1
  %v1327 = vadd.f32 %v1325, %v1326
  %v1328 = vrot.slane %v1290, 4
  %v1329 = vadd.f32 %v1290, %v1328
  %v1330 = vrot.slane %v1329, 2
  %v1331 = vadd.f32 %v1329, %v1330
  %v1332 = vrot.slane %v1331, 1
  %v1333 = vadd.f32 %v1331, %v1332
  %v1334 = vrot.slane %v1291, 4
  %v1335 = vadd.f32 %v1291, %v1334
  %v1336 = vrot.slane %v1335, 2
  %v1337 = vadd.f32 %v1335, %v1336
  %v1338 = vrot.slane %v1337, 1
  %v1339 = vadd.f32 %v1337, %v1338
  %v1340 = vmul.f32 %v1297, %v1180
  %v1341 = vmul.f32 %v1303, %v1181
  %v1342 = vmul.f32 %v1309, %v1182
  %v1343 = vmul.f32 %v1315, %v1183
  %v1344 = vmul.f32 %v1321, %v1184
  %v1345 = vmul.f32 %v1327, %v1185
  %v1346 = vmul.f32 %v1333, %v1186
  %v1347 = vmul.f32 %v1339, %v1187
  %v1348 = vmul.f32 %v1340, %v889
  %v1349 = vmul.f32 %v1341, %v889
  %v1350 = vmul.f32 %v1342, %v889
  %v1351 = vmul.f32 %v1343, %v889
  %v1352 = vmul.f32 %v1344, %v889
  %v1353 = vmul.f32 %v1345, %v889
  %v1354 = vmul.f32 %v1346, %v889
  %v1355 = vmul.f32 %v1347, %v889
  %v1356 = vadd.f32 %v1348, %v739
  %v1357 = vadd.f32 %v1349, %v739
  %v1358 = vadd.f32 %v1350, %v739
  %v1359 = vadd.f32 %v1351, %v739
  %v1360 = vadd.f32 %v1352, %v739
  %v1361 = vadd.f32 %v1353, %v739
  %v1362 = vadd.f32 %v1354, %v739
  %v1363 = vadd.f32 %v1355, %v739
  %1364 = vmax.xlane.f32.xlu0 %v1356
  %v1365 = vpop.xlane.xlu0 %1364
  %1366 = vmax.xlane.f32.xlu0 %v1357
  %v1367 = vpop.xlane.xlu0 %1366
  %1368 = vmax.xlane.f32.xlu0 %v1358
  %v1369 = vpop.xlane.xlu0 %1368
  %1370 = vmax.xlane.f32.xlu0 %v1359
  %v1371 = vpop.xlane.xlu0 %1370
  %1372 = vmax.xlane.f32.xlu0 %v1360
  %v1373 = vpop.xlane.xlu0 %1372
  %1374 = vmax.xlane.f32.xlu0 %v1361
  %v1375 = vpop.xlane.xlu0 %1374
  %1376 = vmax.xlane.f32.xlu0 %v1362
  %v1377 = vpop.xlane.xlu0 %1376
  %1378 = vmax.xlane.f32.xlu0 %v1363
  %v1379 = vpop.xlane.xlu0 %1378
  %v1380 = vsub.f32 %v1356, %v1365
  %v1381 = vsub.f32 %v1357, %v1367
  %v1382 = vsub.f32 %v1358, %v1369
  %v1383 = vsub.f32 %v1359, %v1371
  %v1384 = vsub.f32 %v1360, %v1373
  %v1385 = vsub.f32 %v1361, %v1375
  %v1386 = vsub.f32 %v1362, %v1377
  %v1387 = vsub.f32 %v1363, %v1379
  %v1388 = vmul.f32 %v1380, 1.442695
  %v1389 = vpow.pop %v1388
  %v1390 = vmul.f32 %v1381, 1.442695
  %v1391 = vpow.pop %v1390
  %v1392 = vmul.f32 %v1382, 1.442695
  %v1393 = vpow.pop %v1392
  %v1394 = vmul.f32 %v1383, 1.442695
  %v1395 = vpow.pop %v1394
  %v1396 = vmul.f32 %v1384, 1.442695
  %v1397 = vpow.pop %v1396
  %v1398 = vmul.f32 %v1385, 1.442695
  %v1399 = vpow.pop %v1398
  %v1400 = vmul.f32 %v1386, 1.442695
  %v1401 = vpow.pop %v1400
  %v1402 = vmul.f32 %v1387, 1.442695
  %v1403 = vpow.pop %v1402
  %1404 = vadd.xlane.f32.xlu0 %v1389
  %v1405 = vpop.xlane.xlu0 %1404
  %1406 = vadd.xlane.f32.xlu0 %v1391
  %v1407 = vpop.xlane.xlu0 %1406
  %1408 = vadd.xlane.f32.xlu0 %v1393
  %v1409 = vpop.xlane.xlu0 %1408
  %1410 = vadd.xlane.f32.xlu0 %v1395
  %v1411 = vpop.xlane.xlu0 %1410
  %1412 = vadd.xlane.f32.xlu0 %v1397
  %v1413 = vpop.xlane.xlu0 %1412
  %1414 = vadd.xlane.f32.xlu0 %v1399
  %v1415 = vpop.xlane.xlu0 %1414
  %1416 = vadd.xlane.f32.xlu0 %v1401
  %v1417 = vpop.xlane.xlu0 %1416
  %1418 = vadd.xlane.f32.xlu0 %v1403
  %v1419 = vpop.xlane.xlu0 %1418
  %v1420 = vrcp.pop %v1405
  %v1421 = vrcp.pop %v1407
  %v1422 = vrcp.pop %v1409
  %v1423 = vrcp.pop %v1411
  %v1424 = vrcp.pop %v1413
  %v1425 = vrcp.pop %v1415
  %v1426 = vrcp.pop %v1417
  %v1427 = vrcp.pop %v1419
  %v1428 = vmul.f32 %v1389, %v1420
  %v1429 = vmul.f32 %v1391, %v1421
  %v1430 = vmul.f32 %v1393, %v1422
  %v1431 = vmul.f32 %v1395, %v1423
  %v1432 = vmul.f32 %v1397, %v1424
  %v1433 = vmul.f32 %v1399, %v1425
  %v1434 = vmul.f32 %v1401, %v1426
  %v1435 = vmul.f32 %v1403, %v1427
  %v1436 = vmul.f32 %v1340, %v1428
  %v1437 = vmul.f32 %v1341, %v1429
  %v1438 = vmul.f32 %v1342, %v1430
  %v1439 = vmul.f32 %v1343, %v1431
  %v1440 = vmul.f32 %v1344, %v1432
  %v1441 = vmul.f32 %v1345, %v1433
  %v1442 = vmul.f32 %v1346, %v1434
  %v1443 = vmul.f32 %v1347, %v1435
  %v1444 = vrot.slane %v1436, 4
  %v1445 = vadd.f32 %v1436, %v1444
  %v1446 = vrot.slane %v1445, 2
  %v1447 = vadd.f32 %v1445, %v1446
  %v1448 = vrot.slane %v1447, 1
  %v1449 = vadd.f32 %v1447, %v1448
  %v1450 = vrot.slane %v1437, 4
  %v1451 = vadd.f32 %v1437, %v1450
  %v1452 = vrot.slane %v1451, 2
  %v1453 = vadd.f32 %v1451, %v1452
  %v1454 = vrot.slane %v1453, 1
  %v1455 = vadd.f32 %v1453, %v1454
  %v1456 = vrot.slane %v1438, 4
  %v1457 = vadd.f32 %v1438, %v1456
  %v1458 = vrot.slane %v1457, 2
  %v1459 = vadd.f32 %v1457, %v1458
  %v1460 = vrot.slane %v1459, 1
  %v1461 = vadd.f32 %v1459, %v1460
  %v1462 = vrot.slane %v1439, 4
  %v1463 = vadd.f32 %v1439, %v1462
  %v1464 = vrot.slane %v1463, 2
  %v1465 = vadd.f32 %v1463, %v1464
  %v1466 = vrot.slane %v1465, 1
  %v1467 = vadd.f32 %v1465, %v1466
  %v1468 = vrot.slane %v1440, 4
  %v1469 = vadd.f32 %v1440, %v1468
  %v1470 = vrot.slane %v1469, 2
  %v1471 = vadd.f32 %v1469, %v1470
  %v1472 = vrot.slane %v1471, 1
  %v1473 = vadd.f32 %v1471, %v1472
  %v1474 = vrot.slane %v1441, 4
  %v1475 = vadd.f32 %v1441, %v1474
  %v1476 = vrot.slane %v1475, 2
  %v1477 = vadd.f32 %v1475, %v1476
  %v1478 = vrot.slane %v1477, 1
  %v1479 = vadd.f32 %v1477, %v1478
  %v1480 = vrot.slane %v1442, 4
  %v1481 = vadd.f32 %v1442, %v1480
  %v1482 = vrot.slane %v1481, 2
  %v1483 = vadd.f32 %v1481, %v1482
  %v1484 = vrot.slane %v1483, 1
  %v1485 = vadd.f32 %v1483, %v1484
  %v1486 = vrot.slane %v1443, 4
  %v1487 = vadd.f32 %v1443, %v1486
  %v1488 = vrot.slane %v1487, 2
  %v1489 = vadd.f32 %v1487, %v1488
  %v1490 = vrot.slane %v1489, 1
  %v1491 = vadd.f32 %v1489, %v1490
  %v1492 = vmul.f32 %v1449, %v1188
  %v1493 = vmul.f32 %v1455, %v1189
  %v1494 = vmul.f32 %v1461, %v1190
  %v1495 = vmul.f32 %v1467, %v1191
  %v1496 = vmul.f32 %v1473, %v1192
  %v1497 = vmul.f32 %v1479, %v1193
  %v1498 = vmul.f32 %v1485, %v1194
  %v1499 = vmul.f32 %v1491, %v1195
  %v1500 = vpack.c.bf16 %v1493, %v1492
  %v1501 = vpack.c.bf16 %v1495, %v1494
  %v1502 = vpack.c.bf16 %v1497, %v1496
  %v1503 = vpack.c.bf16 %v1499, %v1498
  %1504 = vmatprep.subr.bf16.mxu0 0
  %1505 = vmatpush1.bf16.msra.mxu0 %v1086
  %1506 = vmatprep.subr.bf16.mxu0 0
  %1507 = vmatpush1.bf16.msra.mxu0 %v1085
  %1508 = vmatprep.subr.bf16.mxu0 0
  %1509 = vmatpush1.bf16.msra.mxu0 %v1084
  %1510 = vmatprep.subr.bf16.mxu0 0
  %1511 = vmatpush1.bf16.msra.mxu0 %v1083
  %1512 = vmatprep.subr.bf16.mxu0 0
  %1513 = vmatpush1.bf16.msra.mxu0 %v1082
  %1514 = vmatprep.subr.bf16.mxu0 0
  %1515 = vmatpush1.bf16.msra.mxu0 %v1081
  %1516 = vmatprep.subr.bf16.mxu0 0
  %1517 = vmatpush1.bf16.msra.mxu0 %v1080
  %1518 = vmatprep.subr.bf16.mxu0 0
  %1519 = vmatpush1.bf16.msra.mxu0 %v1079
  %1520 = vmatprep.subr.bf16.mxu0 0
  %1521 = vmatpush2.bf16.msra.mxu0 0
  %1522 = vmatprep.subr.bf16.mxu0 0
  %1523 = vmatpush2.bf16.msra.mxu0 0
  %1524 = vmatprep.subr.bf16.mxu0 0
  %1525 = vmatpush2.bf16.msra.mxu0 0
  %1526 = vmatprep.subr.bf16.mxu0 0
  %1527 = vmatpush2.bf16.msra.mxu0 0
  %1528 = vmatprep.subr.bf16.mxu0 0
  %1529 = vmatpush2.bf16.msra.mxu0 0
  %1530 = vmatprep.subr.bf16.mxu0 0
  %1531 = vmatpush2.bf16.msra.mxu0 0
  %1532 = vmatprep.subr.bf16.mxu0 0
  %1533 = vmatpush2.bf16.msra.mxu0 0
  %1534 = vmatprep.subr.bf16.mxu0 0
  %1535 = vmatpush2.bf16.msra.mxu0 0
  %1536 = vmatprep.mubr.bf16.mxu0 0
  %1537 = vmatmul.mubr.bf16.gmra.mxu0 %v1500
  %v1538 = vpop.f32.mrf.mxu0
  %v1539 = vadd.f32 %v1172, %v1538
  %v1540 = vpop.f32.mrf.mxu0
  %v1541 = vpop.f32.mrf.mxu0
  %v1542 = vadd.f32 %v1173, %v1541
  %v1543 = vpop.f32.mrf.mxu0
  %1544 = vmatprep.mubr.bf16.mxu0 0
  %1545 = vmatmul.mubr.bf16.gmra.mxu0 %v1501
  %v1546 = vpop.f32.mrf.mxu0
  %v1547 = vadd.f32 %v1174, %v1546
  %v1548 = vpop.f32.mrf.mxu0
  %v1549 = vpop.f32.mrf.mxu0
  %v1550 = vadd.f32 %v1175, %v1549
  %v1551 = vpop.f32.mrf.mxu0
  %1552 = vmatprep.mubr.bf16.mxu0 0
  %1553 = vmatmul.mubr.bf16.gmra.mxu0 %v1502
  %v1554 = vpop.f32.mrf.mxu0
  %v1555 = vadd.f32 %v1176, %v1554
  %v1556 = vpop.f32.mrf.mxu0
  %v1557 = vpop.f32.mrf.mxu0
  %v1558 = vadd.f32 %v1177, %v1557
  %v1559 = vpop.f32.mrf.mxu0
  %1560 = vmatprep.mubr.bf16.mxu0 0
  %1561 = vmatmul.mubr.bf16.gmra.mxu0 %v1503
  %v1562 = vpop.f32.mrf.mxu0
  %v1563 = vadd.f32 %v1178, %v1562
  %v1564 = vpop.f32.mrf.mxu0
  %v1565 = vpop.f32.mrf.mxu0
  %v1566 = vadd.f32 %v1179, %v1565
  %v1567 = vpop.f32.mrf.mxu0
  %1568 = vdwg.mxu0
  %s1569 = scalar_lea.vmem %s6, 64
  %1570 = vst.msk [vmem:[%s1569] sm:$0xff] %vm1160, %v1539
  %1571 = vst.msk [vmem:[%s1569 + $0x8] sm:$0xff] %vm1160, %v1542
  %1572 = vst.msk [vmem:[%s1569 + $0x10] sm:$0xff] %vm1160, %v1547
  %1573 = vst.msk [vmem:[%s1569 + $0x18] sm:$0xff] %vm1160, %v1550
  %1574 = vst.msk [vmem:[%s1569 + $0x20] sm:$0xff] %vm1160, %v1555
  %1575 = vst.msk [vmem:[%s1569 + $0x28] sm:$0xff] %vm1160, %v1558
  %1576 = vst.msk [vmem:[%s1569 + $0x30] sm:$0xff] %vm1160, %v1563
  %1577 = vst.msk [vmem:[%s1569 + $0x38] sm:$0xff] %vm1160, %v1566
  %s1578 = smul.u32 16, 3
  %s1579 = smul.addr %s1578, 8
  %s1580 = scalar_lea.vmem [#allocation2], %s1579
  %v1581 = vld [vmem:[%s1580] sm:$0xff]
  %v1582 = vld [vmem:[%s1580 + $0x18] sm:$0xff]
  %v1583 = vld [vmem:[%s1580 + $0x30] sm:$0xff]
  %v1584 = vld [vmem:[%s1580 + $0x48] sm:$0xff]
  %v1585 = vld [vmem:[%s1580 + $0x60] sm:$0xff]
  %v1586 = vld [vmem:[%s1580 + $0x78] sm:$0xff]
  %v1587 = vld [vmem:[%s1580 + $0x90] sm:$0xff]
  %v1588 = vld [vmem:[%s1580 + $0xa8] sm:$0xff]
  %v1589 = vld [vmem:[%s1580 + $0x8] sm:$0xff]
  %v1590 = vld [vmem:[%s1580 + $0x20] sm:$0xff]
  %v1591 = vld [vmem:[%s1580 + $0x38] sm:$0xff]
  %v1592 = vld [vmem:[%s1580 + $0x50] sm:$0xff]
  %v1593 = vld [vmem:[%s1580 + $0x68] sm:$0xff]
  %v1594 = vld [vmem:[%s1580 + $0x80] sm:$0xff]
  %v1595 = vld [vmem:[%s1580 + $0x98] sm:$0xff]
  %v1596 = vld [vmem:[%s1580 + $0xb0] sm:$0xff]
  %v1597 = vld [vmem:[%s1580 + $0x10] sm:$0xff]
  %v1598 = vld [vmem:[%s1580 + $0x28] sm:$0xff]
  %v1599 = vld [vmem:[%s1580 + $0x40] sm:$0xff]
  %v1600 = vld [vmem:[%s1580 + $0x58] sm:$0xff]
  %v1601 = vld [vmem:[%s1580 + $0x70] sm:$0xff]
  %v1602 = vld [vmem:[%s1580 + $0x88] sm:$0xff]
  %v1603 = vld [vmem:[%s1580 + $0xa0] sm:$0xff]
  %v1604 = vld [vmem:[%s1580 + $0xb8] sm:$0xff]
  %v1605 = vmul.f32 %v1581, %v725
  %v1606 = vmul.f32 %v1582, %v725
  %v1607 = vmul.f32 %v1583, %v725
  %v1608 = vmul.f32 %v1584, %v725
  %v1609 = vmul.f32 %v1585, %v725
  %v1610 = vmul.f32 %v1586, %v725
  %v1611 = vmul.f32 %v1587, %v725
  %v1612 = vmul.f32 %v1588, %v725
  %v1613 = vadd.f32 %v1605, %v739
  %v1614 = vadd.f32 %v1606, %v739
  %v1615 = vadd.f32 %v1607, %v739
  %v1616 = vadd.f32 %v1608, %v739
  %v1617 = vadd.f32 %v1609, %v739
  %v1618 = vadd.f32 %v1610, %v739
  %v1619 = vadd.f32 %v1611, %v739
  %v1620 = vadd.f32 %v1612, %v739
  %1621 = vmax.xlane.f32.xlu0 %v1613
  %v1622 = vpop.xlane.xlu0 %1621
  %1623 = vmax.xlane.f32.xlu0 %v1614
  %v1624 = vpop.xlane.xlu0 %1623
  %1625 = vmax.xlane.f32.xlu0 %v1615
  %v1626 = vpop.xlane.xlu0 %1625
  %1627 = vmax.xlane.f32.xlu0 %v1616
  %v1628 = vpop.xlane.xlu0 %1627
  %1629 = vmax.xlane.f32.xlu0 %v1617
  %v1630 = vpop.xlane.xlu0 %1629
  %1631 = vmax.xlane.f32.xlu0 %v1618
  %v1632 = vpop.xlane.xlu0 %1631
  %1633 = vmax.xlane.f32.xlu0 %v1619
  %v1634 = vpop.xlane.xlu0 %1633
  %1635 = vmax.xlane.f32.xlu0 %v1620
  %v1636 = vpop.xlane.xlu0 %1635
  %v1637 = vsub.f32 %v1613, %v1622
  %v1638 = vsub.f32 %v1614, %v1624
  %v1639 = vsub.f32 %v1615, %v1626
  %v1640 = vsub.f32 %v1616, %v1628
  %v1641 = vsub.f32 %v1617, %v1630
  %v1642 = vsub.f32 %v1618, %v1632
  %v1643 = vsub.f32 %v1619, %v1634
  %v1644 = vsub.f32 %v1620, %v1636
  %v1645 = vmul.f32 %v1637, 1.442695
  %v1646 = vpow.pop %v1645
  %v1647 = vmul.f32 %v1638, 1.442695
  %v1648 = vpow.pop %v1647
  %v1649 = vmul.f32 %v1639, 1.442695
  %v1650 = vpow.pop %v1649
  %v1651 = vmul.f32 %v1640, 1.442695
  %v1652 = vpow.pop %v1651
  %v1653 = vmul.f32 %v1641, 1.442695
  %v1654 = vpow.pop %v1653
  %v1655 = vmul.f32 %v1642, 1.442695
  %v1656 = vpow.pop %v1655
  %v1657 = vmul.f32 %v1643, 1.442695
  %v1658 = vpow.pop %v1657
  %v1659 = vmul.f32 %v1644, 1.442695
  %v1660 = vpow.pop %v1659
  %1661 = vadd.xlane.f32.xlu0 %v1646
  %v1662 = vpop.xlane.xlu0 %1661
  %1663 = vadd.xlane.f32.xlu0 %v1648
  %v1664 = vpop.xlane.xlu0 %1663
  %1665 = vadd.xlane.f32.xlu0 %v1650
  %v1666 = vpop.xlane.xlu0 %1665
  %1667 = vadd.xlane.f32.xlu0 %v1652
  %v1668 = vpop.xlane.xlu0 %1667
  %1669 = vadd.xlane.f32.xlu0 %v1654
  %v1670 = vpop.xlane.xlu0 %1669
  %1671 = vadd.xlane.f32.xlu0 %v1656
  %v1672 = vpop.xlane.xlu0 %1671
  %1673 = vadd.xlane.f32.xlu0 %v1658
  %v1674 = vpop.xlane.xlu0 %1673
  %1675 = vadd.xlane.f32.xlu0 %v1660
  %v1676 = vpop.xlane.xlu0 %1675
  %v1677 = vrcp.pop %v1662
  %v1678 = vrcp.pop %v1664
  %v1679 = vrcp.pop %v1666
  %v1680 = vrcp.pop %v1668
  %v1681 = vrcp.pop %v1670
  %v1682 = vrcp.pop %v1672
  %v1683 = vrcp.pop %v1674
  %v1684 = vrcp.pop %v1676
  %v1685 = vmul.f32 %v1646, %v1677
  %v1686 = vmul.f32 %v1648, %v1678
  %v1687 = vmul.f32 %v1650, %v1679
  %v1688 = vmul.f32 %v1652, %v1680
  %v1689 = vmul.f32 %v1654, %v1681
  %v1690 = vmul.f32 %v1656, %v1682
  %v1691 = vmul.f32 %v1658, %v1683
  %v1692 = vmul.f32 %v1660, %v1684
  %v1693 = vmul.f32 %v1581, %v1685
  %v1694 = vmul.f32 %v1582, %v1686
  %v1695 = vmul.f32 %v1583, %v1687
  %v1696 = vmul.f32 %v1584, %v1688
  %v1697 = vmul.f32 %v1585, %v1689
  %v1698 = vmul.f32 %v1586, %v1690
  %v1699 = vmul.f32 %v1587, %v1691
  %v1700 = vmul.f32 %v1588, %v1692
  %v1701 = vrot.slane %v1693, 4
  %v1702 = vadd.f32 %v1693, %v1701
  %v1703 = vrot.slane %v1702, 2
  %v1704 = vadd.f32 %v1702, %v1703
  %v1705 = vrot.slane %v1704, 1
  %v1706 = vadd.f32 %v1704, %v1705
  %v1707 = vrot.slane %v1694, 4
  %v1708 = vadd.f32 %v1694, %v1707
  %v1709 = vrot.slane %v1708, 2
  %v1710 = vadd.f32 %v1708, %v1709
  %v1711 = vrot.slane %v1710, 1
  %v1712 = vadd.f32 %v1710, %v1711
  %v1713 = vrot.slane %v1695, 4
  %v1714 = vadd.f32 %v1695, %v1713
  %v1715 = vrot.slane %v1714, 2
  %v1716 = vadd.f32 %v1714, %v1715
  %v1717 = vrot.slane %v1716, 1
  %v1718 = vadd.f32 %v1716, %v1717
  %v1719 = vrot.slane %v1696, 4
  %v1720 = vadd.f32 %v1696, %v1719
  %v1721 = vrot.slane %v1720, 2
  %v1722 = vadd.f32 %v1720, %v1721
  %v1723 = vrot.slane %v1722, 1
  %v1724 = vadd.f32 %v1722, %v1723
  %v1725 = vrot.slane %v1697, 4
  %v1726 = vadd.f32 %v1697, %v1725
  %v1727 = vrot.slane %v1726, 2
  %v1728 = vadd.f32 %v1726, %v1727
  %v1729 = vrot.slane %v1728, 1
  %v1730 = vadd.f32 %v1728, %v1729
  %v1731 = vrot.slane %v1698, 4
  %v1732 = vadd.f32 %v1698, %v1731
  %v1733 = vrot.slane %v1732, 2
  %v1734 = vadd.f32 %v1732, %v1733
  %v1735 = vrot.slane %v1734, 1
  %v1736 = vadd.f32 %v1734, %v1735
  %v1737 = vrot.slane %v1699, 4
  %v1738 = vadd.f32 %v1699, %v1737
  %v1739 = vrot.slane %v1738, 2
  %v1740 = vadd.f32 %v1738, %v1739
  %v1741 = vrot.slane %v1740, 1
  %v1742 = vadd.f32 %v1740, %v1741
  %v1743 = vrot.slane %v1700, 4
  %v1744 = vadd.f32 %v1700, %v1743
  %v1745 = vrot.slane %v1744, 2
  %v1746 = vadd.f32 %v1744, %v1745
  %v1747 = vrot.slane %v1746, 1
  %v1748 = vadd.f32 %v1746, %v1747
  %v1749 = vmul.f32 %v1706, %v1589
  %v1750 = vmul.f32 %v1712, %v1590
  %v1751 = vmul.f32 %v1718, %v1591
  %v1752 = vmul.f32 %v1724, %v1592
  %v1753 = vmul.f32 %v1730, %v1593
  %v1754 = vmul.f32 %v1736, %v1594
  %v1755 = vmul.f32 %v1742, %v1595
  %v1756 = vmul.f32 %v1748, %v1596
  %v1757 = vmul.f32 %v1749, %v889
  %v1758 = vmul.f32 %v1750, %v889
  %v1759 = vmul.f32 %v1751, %v889
  %v1760 = vmul.f32 %v1752, %v889
  %v1761 = vmul.f32 %v1753, %v889
  %v1762 = vmul.f32 %v1754, %v889
  %v1763 = vmul.f32 %v1755, %v889
  %v1764 = vmul.f32 %v1756, %v889
  %v1765 = vadd.f32 %v1757, %v739
  %v1766 = vadd.f32 %v1758, %v739
  %v1767 = vadd.f32 %v1759, %v739
  %v1768 = vadd.f32 %v1760, %v739
  %v1769 = vadd.f32 %v1761, %v739
  %v1770 = vadd.f32 %v1762, %v739
  %v1771 = vadd.f32 %v1763, %v739
  %v1772 = vadd.f32 %v1764, %v739
  %1773 = vmax.xlane.f32.xlu0 %v1765
  %v1774 = vpop.xlane.xlu0 %1773
  %1775 = vmax.xlane.f32.xlu0 %v1766
  %v1776 = vpop.xlane.xlu0 %1775
  %1777 = vmax.xlane.f32.xlu0 %v1767
  %v1778 = vpop.xlane.xlu0 %1777
  %1779 = vmax.xlane.f32.xlu0 %v1768
  %v1780 = vpop.xlane.xlu0 %1779
  %1781 = vmax.xlane.f32.xlu0 %v1769
  %v1782 = vpop.xlane.xlu0 %1781
  %1783 = vmax.xlane.f32.xlu0 %v1770
  %v1784 = vpop.xlane.xlu0 %1783
  %1785 = vmax.xlane.f32.xlu0 %v1771
  %v1786 = vpop.xlane.xlu0 %1785
  %1787 = vmax.xlane.f32.xlu0 %v1772
  %v1788 = vpop.xlane.xlu0 %1787
  %v1789 = vsub.f32 %v1765, %v1774
  %v1790 = vsub.f32 %v1766, %v1776
  %v1791 = vsub.f32 %v1767, %v1778
  %v1792 = vsub.f32 %v1768, %v1780
  %v1793 = vsub.f32 %v1769, %v1782
  %v1794 = vsub.f32 %v1770, %v1784
  %v1795 = vsub.f32 %v1771, %v1786
  %v1796 = vsub.f32 %v1772, %v1788
  %v1797 = vmul.f32 %v1789, 1.442695
  %v1798 = vpow.pop %v1797
  %v1799 = vmul.f32 %v1790, 1.442695
  %v1800 = vpow.pop %v1799
  %v1801 = vmul.f32 %v1791, 1.442695
  %v1802 = vpow.pop %v1801
  %v1803 = vmul.f32 %v1792, 1.442695
  %v1804 = vpow.pop %v1803
  %v1805 = vmul.f32 %v1793, 1.442695
  %v1806 = vpow.pop %v1805
  %v1807 = vmul.f32 %v1794, 1.442695
  %v1808 = vpow.pop %v1807
  %v1809 = vmul.f32 %v1795, 1.442695
  %v1810 = vpow.pop %v1809
  %v1811 = vmul.f32 %v1796, 1.442695
  %v1812 = vpow.pop %v1811
  %1813 = vadd.xlane.f32.xlu0 %v1798
  %v1814 = vpop.xlane.xlu0 %1813
  %1815 = vadd.xlane.f32.xlu0 %v1800
  %v1816 = vpop.xlane.xlu0 %1815
  %1817 = vadd.xlane.f32.xlu0 %v1802
  %v1818 = vpop.xlane.xlu0 %1817
  %1819 = vadd.xlane.f32.xlu0 %v1804
  %v1820 = vpop.xlane.xlu0 %1819
  %1821 = vadd.xlane.f32.xlu0 %v1806
  %v1822 = vpop.xlane.xlu0 %1821
  %1823 = vadd.xlane.f32.xlu0 %v1808
  %v1824 = vpop.xlane.xlu0 %1823
  %1825 = vadd.xlane.f32.xlu0 %v1810
  %v1826 = vpop.xlane.xlu0 %1825
  %1827 = vadd.xlane.f32.xlu0 %v1812
  %v1828 = vpop.xlane.xlu0 %1827
  %v1829 = vrcp.pop %v1814
  %v1830 = vrcp.pop %v1816
  %v1831 = vrcp.pop %v1818
  %v1832 = vrcp.pop %v1820
  %v1833 = vrcp.pop %v1822
  %v1834 = vrcp.pop %v1824
  %v1835 = vrcp.pop %v1826
  %v1836 = vrcp.pop %v1828
  %v1837 = vmul.f32 %v1798, %v1829
  %v1838 = vmul.f32 %v1800, %v1830
  %v1839 = vmul.f32 %v1802, %v1831
  %v1840 = vmul.f32 %v1804, %v1832
  %v1841 = vmul.f32 %v1806, %v1833
  %v1842 = vmul.f32 %v1808, %v1834
  %v1843 = vmul.f32 %v1810, %v1835
  %v1844 = vmul.f32 %v1812, %v1836
  %v1845 = vmul.f32 %v1749, %v1837
  %v1846 = vmul.f32 %v1750, %v1838
  %v1847 = vmul.f32 %v1751, %v1839
  %v1848 = vmul.f32 %v1752, %v1840
  %v1849 = vmul.f32 %v1753, %v1841
  %v1850 = vmul.f32 %v1754, %v1842
  %v1851 = vmul.f32 %v1755, %v1843
  %v1852 = vmul.f32 %v1756, %v1844
  %v1853 = vrot.slane %v1845, 4
  %v1854 = vadd.f32 %v1845, %v1853
  %v1855 = vrot.slane %v1854, 2
  %v1856 = vadd.f32 %v1854, %v1855
  %v1857 = vrot.slane %v1856, 1
  %v1858 = vadd.f32 %v1856, %v1857
  %v1859 = vrot.slane %v1846, 4
  %v1860 = vadd.f32 %v1846, %v1859
  %v1861 = vrot.slane %v1860, 2
  %v1862 = vadd.f32 %v1860, %v1861
  %v1863 = vrot.slane %v1862, 1
  %v1864 = vadd.f32 %v1862, %v1863
  %v1865 = vrot.slane %v1847, 4
  %v1866 = vadd.f32 %v1847, %v1865
  %v1867 = vrot.slane %v1866, 2
  %v1868 = vadd.f32 %v1866, %v1867
  %v1869 = vrot.slane %v1868, 1
  %v1870 = vadd.f32 %v1868, %v1869
  %v1871 = vrot.slane %v1848, 4
  %v1872 = vadd.f32 %v1848, %v1871
  %v1873 = vrot.slane %v1872, 2
  %v1874 = vadd.f32 %v1872, %v1873
  %v1875 = vrot.slane %v1874, 1
  %v1876 = vadd.f32 %v1874, %v1875
  %v1877 = vrot.slane %v1849, 4
  %v1878 = vadd.f32 %v1849, %v1877
  %v1879 = vrot.slane %v1878, 2
  %v1880 = vadd.f32 %v1878, %v1879
  %v1881 = vrot.slane %v1880, 1
  %v1882 = vadd.f32 %v1880, %v1881
  %v1883 = vrot.slane %v1850, 4
  %v1884 = vadd.f32 %v1850, %v1883
  %v1885 = vrot.slane %v1884, 2
  %v1886 = vadd.f32 %v1884, %v1885
  %v1887 = vrot.slane %v1886, 1
  %v1888 = vadd.f32 %v1886, %v1887
  %v1889 = vrot.slane %v1851, 4
  %v1890 = vadd.f32 %v1851, %v1889
  %v1891 = vrot.slane %v1890, 2
  %v1892 = vadd.f32 %v1890, %v1891
  %v1893 = vrot.slane %v1892, 1
  %v1894 = vadd.f32 %v1892, %v1893
  %v1895 = vrot.slane %v1852, 4
  %v1896 = vadd.f32 %v1852, %v1895
  %v1897 = vrot.slane %v1896, 2
  %v1898 = vadd.f32 %v1896, %v1897
  %v1899 = vrot.slane %v1898, 1
  %v1900 = vadd.f32 %v1898, %v1899
  %v1901 = vmul.f32 %v1858, %v1597
  %v1902 = vmul.f32 %v1864, %v1598
  %v1903 = vmul.f32 %v1870, %v1599
  %v1904 = vmul.f32 %v1876, %v1600
  %v1905 = vmul.f32 %v1882, %v1601
  %v1906 = vmul.f32 %v1888, %v1602
  %v1907 = vmul.f32 %v1894, %v1603
  %v1908 = vmul.f32 %v1900, %v1604
  %v1909 = vpack.c.bf16 %v1902, %v1901
  %v1910 = vpack.c.bf16 %v1904, %v1903
  %v1911 = vpack.c.bf16 %v1906, %v1905
  %v1912 = vpack.c.bf16 %v1908, %v1907
  %1913 = vmatprep.subr.bf16.mxu0 0
  %1914 = vmatpush1.bf16.msra.mxu0 %v1086
  %1915 = vmatprep.subr.bf16.mxu0 0
  %1916 = vmatpush1.bf16.msra.mxu0 %v1085
  %1917 = vmatprep.subr.bf16.mxu0 0
  %1918 = vmatpush1.bf16.msra.mxu0 %v1084
  %1919 = vmatprep.subr.bf16.mxu0 0
  %1920 = vmatpush1.bf16.msra.mxu0 %v1083
  %1921 = vmatprep.subr.bf16.mxu0 0
  %1922 = vmatpush1.bf16.msra.mxu0 %v1082
  %1923 = vmatprep.subr.bf16.mxu0 0
  %1924 = vmatpush1.bf16.msra.mxu0 %v1081
  %1925 = vmatprep.subr.bf16.mxu0 0
  %1926 = vmatpush1.bf16.msra.mxu0 %v1080
  %1927 = vmatprep.subr.bf16.mxu0 0
  %1928 = vmatpush1.bf16.msra.mxu0 %v1079
  %1929 = vmatprep.subr.bf16.mxu0 0
  %1930 = vmatpush2.bf16.msra.mxu0 0
  %1931 = vmatprep.subr.bf16.mxu0 0
  %1932 = vmatpush2.bf16.msra.mxu0 0
  %1933 = vmatprep.subr.bf16.mxu0 0
  %1934 = vmatpush2.bf16.msra.mxu0 0
  %1935 = vmatprep.subr.bf16.mxu0 0
  %1936 = vmatpush2.bf16.msra.mxu0 0
  %1937 = vmatprep.subr.bf16.mxu0 0
  %1938 = vmatpush2.bf16.msra.mxu0 0
  %1939 = vmatprep.subr.bf16.mxu0 0
  %1940 = vmatpush2.bf16.msra.mxu0 0
  %1941 = vmatprep.subr.bf16.mxu0 0
  %1942 = vmatpush2.bf16.msra.mxu0 0
  %1943 = vmatprep.subr.bf16.mxu0 0
  %1944 = vmatpush2.bf16.msra.mxu0 0
  %1945 = vmatprep.mubr.bf16.mxu0 0
  %1946 = vmatmul.mubr.bf16.gmra.mxu0 %v1909
  %v1947 = vpop.f32.mrf.mxu0
  %v1948 = vadd.f32 %v1581, %v1947
  %v1949 = vpop.f32.mrf.mxu0
  %v1950 = vpop.f32.mrf.mxu0
  %v1951 = vadd.f32 %v1582, %v1950
  %v1952 = vpop.f32.mrf.mxu0
  %1953 = vmatprep.mubr.bf16.mxu0 0
  %1954 = vmatmul.mubr.bf16.gmra.mxu0 %v1910
  %v1955 = vpop.f32.mrf.mxu0
  %v1956 = vadd.f32 %v1583, %v1955
  %v1957 = vpop.f32.mrf.mxu0
  %v1958 = vpop.f32.mrf.mxu0
  %v1959 = vadd.f32 %v1584, %v1958
  %v1960 = vpop.f32.mrf.mxu0
  %1961 = vmatprep.mubr.bf16.mxu0 0
  %1962 = vmatmul.mubr.bf16.gmra.mxu0 %v1911
  %v1963 = vpop.f32.mrf.mxu0
  %v1964 = vadd.f32 %v1585, %v1963
  %v1965 = vpop.f32.mrf.mxu0
  %v1966 = vpop.f32.mrf.mxu0
  %v1967 = vadd.f32 %v1586, %v1966
  %v1968 = vpop.f32.mrf.mxu0
  %1969 = vmatprep.mubr.bf16.mxu0 0
  %1970 = vmatmul.mubr.bf16.gmra.mxu0 %v1912
  %v1971 = vpop.f32.mrf.mxu0
  %v1972 = vadd.f32 %v1587, %v1971
  %v1973 = vpop.f32.mrf.mxu0
  %v1974 = vpop.f32.mrf.mxu0
  %v1975 = vadd.f32 %v1588, %v1974
  %v1976 = vpop.f32.mrf.mxu0
  %1977 = vdwg.mxu0
  %s1978 = scalar_lea.vmem %s6, 128
  %1979 = vst.msk [vmem:[%s1978] sm:$0xff] %vm1160, %v1948
  %1980 = vst.msk [vmem:[%s1978 + $0x8] sm:$0xff] %vm1160, %v1951
  %1981 = vst.msk [vmem:[%s1978 + $0x10] sm:$0xff] %vm1160, %v1956
  %1982 = vst.msk [vmem:[%s1978 + $0x18] sm:$0xff] %vm1160, %v1959
  %1983 = vst.msk [vmem:[%s1978 + $0x20] sm:$0xff] %vm1160, %v1964
  %1984 = vst.msk [vmem:[%s1978 + $0x28] sm:$0xff] %vm1160, %v1967
  %1985 = vst.msk [vmem:[%s1978 + $0x30] sm:$0xff] %vm1160, %v1972
  %1986 = vst.msk [vmem:[%s1978 + $0x38] sm:$0xff] %vm1160, %v1975
  %s1987 = smul.u32 24, 3
  %s1988 = smul.addr %s1987, 8
  %s1989 = scalar_lea.vmem [#allocation2], %s1988
  %v1990 = vld [vmem:[%s1989] sm:$0xff]
  %v1991 = vld [vmem:[%s1989 + $0x18] sm:$0xff]
  %v1992 = vld [vmem:[%s1989 + $0x30] sm:$0xff]
  %v1993 = vld [vmem:[%s1989 + $0x48] sm:$0xff]
  %v1994 = vld [vmem:[%s1989 + $0x60] sm:$0xff]
  %v1995 = vld [vmem:[%s1989 + $0x78] sm:$0xff]
  %v1996 = vld [vmem:[%s1989 + $0x90] sm:$0xff]
  %v1997 = vld [vmem:[%s1989 + $0xa8] sm:$0xff]
  %v1998 = vld [vmem:[%s1989 + $0x8] sm:$0xff]
  %v1999 = vld [vmem:[%s1989 + $0x20] sm:$0xff]
  %v2000 = vld [vmem:[%s1989 + $0x38] sm:$0xff]
  %v2001 = vld [vmem:[%s1989 + $0x50] sm:$0xff]
  %v2002 = vld [vmem:[%s1989 + $0x68] sm:$0xff]
  %v2003 = vld [vmem:[%s1989 + $0x80] sm:$0xff]
  %v2004 = vld [vmem:[%s1989 + $0x98] sm:$0xff]
  %v2005 = vld [vmem:[%s1989 + $0xb0] sm:$0xff]
  %v2006 = vld [vmem:[%s1989 + $0x10] sm:$0xff]
  %v2007 = vld [vmem:[%s1989 + $0x28] sm:$0xff]
  %v2008 = vld [vmem:[%s1989 + $0x40] sm:$0xff]
  %v2009 = vld [vmem:[%s1989 + $0x58] sm:$0xff]
  %v2010 = vld [vmem:[%s1989 + $0x70] sm:$0xff]
  %v2011 = vld [vmem:[%s1989 + $0x88] sm:$0xff]
  %v2012 = vld [vmem:[%s1989 + $0xa0] sm:$0xff]
  %v2013 = vld [vmem:[%s1989 + $0xb8] sm:$0xff]
  %v2014 = vmul.f32 %v1990, %v725
  %v2015 = vmul.f32 %v1991, %v725
  %v2016 = vmul.f32 %v1992, %v725
  %v2017 = vmul.f32 %v1993, %v725
  %v2018 = vmul.f32 %v1994, %v725
  %v2019 = vmul.f32 %v1995, %v725
  %v2020 = vmul.f32 %v1996, %v725
  %v2021 = vmul.f32 %v1997, %v725
  %v2022 = vadd.f32 %v2014, %v739
  %v2023 = vadd.f32 %v2015, %v739
  %v2024 = vadd.f32 %v2016, %v739
  %v2025 = vadd.f32 %v2017, %v739
  %v2026 = vadd.f32 %v2018, %v739
  %v2027 = vadd.f32 %v2019, %v739
  %v2028 = vadd.f32 %v2020, %v739
  %v2029 = vadd.f32 %v2021, %v739
  %2030 = vmax.xlane.f32.xlu0 %v2022
  %v2031 = vpop.xlane.xlu0 %2030
  %2032 = vmax.xlane.f32.xlu0 %v2023
  %v2033 = vpop.xlane.xlu0 %2032
  %2034 = vmax.xlane.f32.xlu0 %v2024
  %v2035 = vpop.xlane.xlu0 %2034
  %2036 = vmax.xlane.f32.xlu0 %v2025
  %v2037 = vpop.xlane.xlu0 %2036
  %2038 = vmax.xlane.f32.xlu0 %v2026
  %v2039 = vpop.xlane.xlu0 %2038
  %2040 = vmax.xlane.f32.xlu0 %v2027
  %v2041 = vpop.xlane.xlu0 %2040
  %2042 = vmax.xlane.f32.xlu0 %v2028
  %v2043 = vpop.xlane.xlu0 %2042
  %2044 = vmax.xlane.f32.xlu0 %v2029
  %v2045 = vpop.xlane.xlu0 %2044
  %v2046 = vsub.f32 %v2022, %v2031
  %v2047 = vsub.f32 %v2023, %v2033
  %v2048 = vsub.f32 %v2024, %v2035
  %v2049 = vsub.f32 %v2025, %v2037
  %v2050 = vsub.f32 %v2026, %v2039
  %v2051 = vsub.f32 %v2027, %v2041
  %v2052 = vsub.f32 %v2028, %v2043
  %v2053 = vsub.f32 %v2029, %v2045
  %v2054 = vmul.f32 %v2046, 1.442695
  %v2055 = vpow.pop %v2054
  %v2056 = vmul.f32 %v2047, 1.442695
  %v2057 = vpow.pop %v2056
  %v2058 = vmul.f32 %v2048, 1.442695
  %v2059 = vpow.pop %v2058
  %v2060 = vmul.f32 %v2049, 1.442695
  %v2061 = vpow.pop %v2060
  %v2062 = vmul.f32 %v2050, 1.442695
  %v2063 = vpow.pop %v2062
  %v2064 = vmul.f32 %v2051, 1.442695
  %v2065 = vpow.pop %v2064
  %v2066 = vmul.f32 %v2052, 1.442695
  %v2067 = vpow.pop %v2066
  %v2068 = vmul.f32 %v2053, 1.442695
  %v2069 = vpow.pop %v2068
  %2070 = vadd.xlane.f32.xlu0 %v2055
  %v2071 = vpop.xlane.xlu0 %2070
  %2072 = vadd.xlane.f32.xlu0 %v2057
  %v2073 = vpop.xlane.xlu0 %2072
  %2074 = vadd.xlane.f32.xlu0 %v2059
  %v2075 = vpop.xlane.xlu0 %2074
  %2076 = vadd.xlane.f32.xlu0 %v2061
  %v2077 = vpop.xlane.xlu0 %2076
  %2078 = vadd.xlane.f32.xlu0 %v2063
  %v2079 = vpop.xlane.xlu0 %2078
  %2080 = vadd.xlane.f32.xlu0 %v2065
  %v2081 = vpop.xlane.xlu0 %2080
  %2082 = vadd.xlane.f32.xlu0 %v2067
  %v2083 = vpop.xlane.xlu0 %2082
  %2084 = vadd.xlane.f32.xlu0 %v2069
  %v2085 = vpop.xlane.xlu0 %2084
  %v2086 = vrcp.pop %v2071
  %v2087 = vrcp.pop %v2073
  %v2088 = vrcp.pop %v2075
  %v2089 = vrcp.pop %v2077
  %v2090 = vrcp.pop %v2079
  %v2091 = vrcp.pop %v2081
  %v2092 = vrcp.pop %v2083
  %v2093 = vrcp.pop %v2085
  %v2094 = vmul.f32 %v2055, %v2086
  %v2095 = vmul.f32 %v2057, %v2087
  %v2096 = vmul.f32 %v2059, %v2088
  %v2097 = vmul.f32 %v2061, %v2089
  %v2098 = vmul.f32 %v2063, %v2090
  %v2099 = vmul.f32 %v2065, %v2091
  %v2100 = vmul.f32 %v2067, %v2092
  %v2101 = vmul.f32 %v2069, %v2093
  %v2102 = vmul.f32 %v1990, %v2094
  %v2103 = vmul.f32 %v1991, %v2095
  %v2104 = vmul.f32 %v1992, %v2096
  %v2105 = vmul.f32 %v1993, %v2097
  %v2106 = vmul.f32 %v1994, %v2098
  %v2107 = vmul.f32 %v1995, %v2099
  %v2108 = vmul.f32 %v1996, %v2100
  %v2109 = vmul.f32 %v1997, %v2101
  %v2110 = vrot.slane %v2102, 4
  %v2111 = vadd.f32 %v2102, %v2110
  %v2112 = vrot.slane %v2111, 2
  %v2113 = vadd.f32 %v2111, %v2112
  %v2114 = vrot.slane %v2113, 1
  %v2115 = vadd.f32 %v2113, %v2114
  %v2116 = vrot.slane %v2103, 4
  %v2117 = vadd.f32 %v2103, %v2116
  %v2118 = vrot.slane %v2117, 2
  %v2119 = vadd.f32 %v2117, %v2118
  %v2120 = vrot.slane %v2119, 1
  %v2121 = vadd.f32 %v2119, %v2120
  %v2122 = vrot.slane %v2104, 4
  %v2123 = vadd.f32 %v2104, %v2122
  %v2124 = vrot.slane %v2123, 2
  %v2125 = vadd.f32 %v2123, %v2124
  %v2126 = vrot.slane %v2125, 1
  %v2127 = vadd.f32 %v2125, %v2126
  %v2128 = vrot.slane %v2105, 4
  %v2129 = vadd.f32 %v2105, %v2128
  %v2130 = vrot.slane %v2129, 2
  %v2131 = vadd.f32 %v2129, %v2130
  %v2132 = vrot.slane %v2131, 1
  %v2133 = vadd.f32 %v2131, %v2132
  %v2134 = vrot.slane %v2106, 4
  %v2135 = vadd.f32 %v2106, %v2134
  %v2136 = vrot.slane %v2135, 2
  %v2137 = vadd.f32 %v2135, %v2136
  %v2138 = vrot.slane %v2137, 1
  %v2139 = vadd.f32 %v2137, %v2138
  %v2140 = vrot.slane %v2107, 4
  %v2141 = vadd.f32 %v2107, %v2140
  %v2142 = vrot.slane %v2141, 2
  %v2143 = vadd.f32 %v2141, %v2142
  %v2144 = vrot.slane %v2143, 1
  %v2145 = vadd.f32 %v2143, %v2144
  %v2146 = vrot.slane %v2108, 4
  %v2147 = vadd.f32 %v2108, %v2146
  %v2148 = vrot.slane %v2147, 2
  %v2149 = vadd.f32 %v2147, %v2148
  %v2150 = vrot.slane %v2149, 1
  %v2151 = vadd.f32 %v2149, %v2150
  %v2152 = vrot.slane %v2109, 4
  %v2153 = vadd.f32 %v2109, %v2152
  %v2154 = vrot.slane %v2153, 2
  %v2155 = vadd.f32 %v2153, %v2154
  %v2156 = vrot.slane %v2155, 1
  %v2157 = vadd.f32 %v2155, %v2156
  %v2158 = vmul.f32 %v2115, %v1998
  %v2159 = vmul.f32 %v2121, %v1999
  %v2160 = vmul.f32 %v2127, %v2000
  %v2161 = vmul.f32 %v2133, %v2001
  %v2162 = vmul.f32 %v2139, %v2002
  %v2163 = vmul.f32 %v2145, %v2003
  %v2164 = vmul.f32 %v2151, %v2004
  %v2165 = vmul.f32 %v2157, %v2005
  %v2166 = vmul.f32 %v2158, %v889
  %v2167 = vmul.f32 %v2159, %v889
  %v2168 = vmul.f32 %v2160, %v889
  %v2169 = vmul.f32 %v2161, %v889
  %v2170 = vmul.f32 %v2162, %v889
  %v2171 = vmul.f32 %v2163, %v889
  %v2172 = vmul.f32 %v2164, %v889
  %v2173 = vmul.f32 %v2165, %v889
  %v2174 = vadd.f32 %v2166, %v739
  %v2175 = vadd.f32 %v2167, %v739
  %v2176 = vadd.f32 %v2168, %v739
  %v2177 = vadd.f32 %v2169, %v739
  %v2178 = vadd.f32 %v2170, %v739
  %v2179 = vadd.f32 %v2171, %v739
  %v2180 = vadd.f32 %v2172, %v739
  %v2181 = vadd.f32 %v2173, %v739
  %2182 = vmax.xlane.f32.xlu0 %v2174
  %v2183 = vpop.xlane.xlu0 %2182
  %2184 = vmax.xlane.f32.xlu0 %v2175
  %v2185 = vpop.xlane.xlu0 %2184
  %2186 = vmax.xlane.f32.xlu0 %v2176
  %v2187 = vpop.xlane.xlu0 %2186
  %2188 = vmax.xlane.f32.xlu0 %v2177
  %v2189 = vpop.xlane.xlu0 %2188
  %2190 = vmax.xlane.f32.xlu0 %v2178
  %v2191 = vpop.xlane.xlu0 %2190
  %2192 = vmax.xlane.f32.xlu0 %v2179
  %v2193 = vpop.xlane.xlu0 %2192
  %2194 = vmax.xlane.f32.xlu0 %v2180
  %v2195 = vpop.xlane.xlu0 %2194
  %2196 = vmax.xlane.f32.xlu0 %v2181
  %v2197 = vpop.xlane.xlu0 %2196
  %v2198 = vsub.f32 %v2174, %v2183
  %v2199 = vsub.f32 %v2175, %v2185
  %v2200 = vsub.f32 %v2176, %v2187
  %v2201 = vsub.f32 %v2177, %v2189
  %v2202 = vsub.f32 %v2178, %v2191
  %v2203 = vsub.f32 %v2179, %v2193
  %v2204 = vsub.f32 %v2180, %v2195
  %v2205 = vsub.f32 %v2181, %v2197
  %v2206 = vmul.f32 %v2198, 1.442695
  %v2207 = vpow.pop %v2206
  %v2208 = vmul.f32 %v2199, 1.442695
  %v2209 = vpow.pop %v2208
  %v2210 = vmul.f32 %v2200, 1.442695
  %v2211 = vpow.pop %v2210
  %v2212 = vmul.f32 %v2201, 1.442695
  %v2213 = vpow.pop %v2212
  %v2214 = vmul.f32 %v2202, 1.442695
  %v2215 = vpow.pop %v2214
  %v2216 = vmul.f32 %v2203, 1.442695
  %v2217 = vpow.pop %v2216
  %v2218 = vmul.f32 %v2204, 1.442695
  %v2219 = vpow.pop %v2218
  %v2220 = vmul.f32 %v2205, 1.442695
  %v2221 = vpow.pop %v2220
  %2222 = vadd.xlane.f32.xlu0 %v2207
  %v2223 = vpop.xlane.xlu0 %2222
  %2224 = vadd.xlane.f32.xlu0 %v2209
  %v2225 = vpop.xlane.xlu0 %2224
  %2226 = vadd.xlane.f32.xlu0 %v2211
  %v2227 = vpop.xlane.xlu0 %2226
  %2228 = vadd.xlane.f32.xlu0 %v2213
  %v2229 = vpop.xlane.xlu0 %2228
  %2230 = vadd.xlane.f32.xlu0 %v2215
  %v2231 = vpop.xlane.xlu0 %2230
  %2232 = vadd.xlane.f32.xlu0 %v2217
  %v2233 = vpop.xlane.xlu0 %2232
  %2234 = vadd.xlane.f32.xlu0 %v2219
  %v2235 = vpop.xlane.xlu0 %2234
  %2236 = vadd.xlane.f32.xlu0 %v2221
  %v2237 = vpop.xlane.xlu0 %2236
  %v2238 = vrcp.pop %v2223
  %v2239 = vrcp.pop %v2225
  %v2240 = vrcp.pop %v2227
  %v2241 = vrcp.pop %v2229
  %v2242 = vrcp.pop %v2231
  %v2243 = vrcp.pop %v2233
  %v2244 = vrcp.pop %v2235
  %v2245 = vrcp.pop %v2237
  %v2246 = vmul.f32 %v2207, %v2238
  %v2247 = vmul.f32 %v2209, %v2239
  %v2248 = vmul.f32 %v2211, %v2240
  %v2249 = vmul.f32 %v2213, %v2241
  %v2250 = vmul.f32 %v2215, %v2242
  %v2251 = vmul.f32 %v2217, %v2243
  %v2252 = vmul.f32 %v2219, %v2244
  %v2253 = vmul.f32 %v2221, %v2245
  %v2254 = vmul.f32 %v2158, %v2246
  %v2255 = vmul.f32 %v2159, %v2247
  %v2256 = vmul.f32 %v2160, %v2248
  %v2257 = vmul.f32 %v2161, %v2249
  %v2258 = vmul.f32 %v2162, %v2250
  %v2259 = vmul.f32 %v2163, %v2251
  %v2260 = vmul.f32 %v2164, %v2252
  %v2261 = vmul.f32 %v2165, %v2253
  %v2262 = vrot.slane %v2254, 4
  %v2263 = vadd.f32 %v2254, %v2262
  %v2264 = vrot.slane %v2263, 2
  %v2265 = vadd.f32 %v2263, %v2264
  %v2266 = vrot.slane %v2265, 1
  %v2267 = vadd.f32 %v2265, %v2266
  %v2268 = vrot.slane %v2255, 4
  %v2269 = vadd.f32 %v2255, %v2268
  %v2270 = vrot.slane %v2269, 2
  %v2271 = vadd.f32 %v2269, %v2270
  %v2272 = vrot.slane %v2271, 1
  %v2273 = vadd.f32 %v2271, %v2272
  %v2274 = vrot.slane %v2256, 4
  %v2275 = vadd.f32 %v2256, %v2274
  %v2276 = vrot.slane %v2275, 2
  %v2277 = vadd.f32 %v2275, %v2276
  %v2278 = vrot.slane %v2277, 1
  %v2279 = vadd.f32 %v2277, %v2278
  %v2280 = vrot.slane %v2257, 4
  %v2281 = vadd.f32 %v2257, %v2280
  %v2282 = vrot.slane %v2281, 2
  %v2283 = vadd.f32 %v2281, %v2282
  %v2284 = vrot.slane %v2283, 1
  %v2285 = vadd.f32 %v2283, %v2284
  %v2286 = vrot.slane %v2258, 4
  %v2287 = vadd.f32 %v2258, %v2286
  %v2288 = vrot.slane %v2287, 2
  %v2289 = vadd.f32 %v2287, %v2288
  %v2290 = vrot.slane %v2289, 1
  %v2291 = vadd.f32 %v2289, %v2290
  %v2292 = vrot.slane %v2259, 4
  %v2293 = vadd.f32 %v2259, %v2292
  %v2294 = vrot.slane %v2293, 2
  %v2295 = vadd.f32 %v2293, %v2294
  %v2296 = vrot.slane %v2295, 1
  %v2297 = vadd.f32 %v2295, %v2296
  %v2298 = vrot.slane %v2260, 4
  %v2299 = vadd.f32 %v2260, %v2298
  %v2300 = vrot.slane %v2299, 2
  %v2301 = vadd.f32 %v2299, %v2300
  %v2302 = vrot.slane %v2301, 1
  %v2303 = vadd.f32 %v2301, %v2302
  %v2304 = vrot.slane %v2261, 4
  %v2305 = vadd.f32 %v2261, %v2304
  %v2306 = vrot.slane %v2305, 2
  %v2307 = vadd.f32 %v2305, %v2306
  %v2308 = vrot.slane %v2307, 1
  %v2309 = vadd.f32 %v2307, %v2308
  %v2310 = vmul.f32 %v2267, %v2006
  %v2311 = vmul.f32 %v2273, %v2007
  %v2312 = vmul.f32 %v2279, %v2008
  %v2313 = vmul.f32 %v2285, %v2009
  %v2314 = vmul.f32 %v2291, %v2010
  %v2315 = vmul.f32 %v2297, %v2011
  %v2316 = vmul.f32 %v2303, %v2012
  %v2317 = vmul.f32 %v2309, %v2013
  %v2318 = vpack.c.bf16 %v2311, %v2310
  %v2319 = vpack.c.bf16 %v2313, %v2312
  %v2320 = vpack.c.bf16 %v2315, %v2314
  %v2321 = vpack.c.bf16 %v2317, %v2316
  %2322 = vmatprep.subr.bf16.mxu0 0
  %2323 = vmatpush1.bf16.msra.mxu0 %v1086
  %2324 = vmatprep.subr.bf16.mxu0 0
  %2325 = vmatpush1.bf16.msra.mxu0 %v1085
  %2326 = vmatprep.subr.bf16.mxu0 0
  %2327 = vmatpush1.bf16.msra.mxu0 %v1084
  %2328 = vmatprep.subr.bf16.mxu0 0
  %2329 = vmatpush1.bf16.msra.mxu0 %v1083
  %2330 = vmatprep.subr.bf16.mxu0 0
  %2331 = vmatpush1.bf16.msra.mxu0 %v1082
  %2332 = vmatprep.subr.bf16.mxu0 0
  %2333 = vmatpush1.bf16.msra.mxu0 %v1081
  %2334 = vmatprep.subr.bf16.mxu0 0
  %2335 = vmatpush1.bf16.msra.mxu0 %v1080
  %2336 = vmatprep.subr.bf16.mxu0 0
  %2337 = vmatpush1.bf16.msra.mxu0 %v1079
  %2338 = vmatprep.subr.bf16.mxu0 0
  %2339 = vmatpush2.bf16.msra.mxu0 0
  %2340 = vmatprep.subr.bf16.mxu0 0
  %2341 = vmatpush2.bf16.msra.mxu0 0
  %2342 = vmatprep.subr.bf16.mxu0 0
  %2343 = vmatpush2.bf16.msra.mxu0 0
  %2344 = vmatprep.subr.bf16.mxu0 0
  %2345 = vmatpush2.bf16.msra.mxu0 0
  %2346 = vmatprep.subr.bf16.mxu0 0
  %2347 = vmatpush2.bf16.msra.mxu0 0
  %2348 = vmatprep.subr.bf16.mxu0 0
  %2349 = vmatpush2.bf16.msra.mxu0 0
  %2350 = vmatprep.subr.bf16.mxu0 0
  %2351 = vmatpush2.bf16.msra.mxu0 0
  %2352 = vmatprep.subr.bf16.mxu0 0
  %2353 = vmatpush2.bf16.msra.mxu0 0
  %2354 = vmatprep.mubr.bf16.mxu0 0
  %2355 = vmatmul.mubr.bf16.gmra.mxu0 %v2318
  %v2356 = vpop.f32.mrf.mxu0
  %v2357 = vadd.f32 %v1990, %v2356
  %v2358 = vpop.f32.mrf.mxu0
  %v2359 = vpop.f32.mrf.mxu0
  %v2360 = vadd.f32 %v1991, %v2359
  %v2361 = vpop.f32.mrf.mxu0
  %2362 = vmatprep.mubr.bf16.mxu0 0
  %2363 = vmatmul.mubr.bf16.gmra.mxu0 %v2319
  %v2364 = vpop.f32.mrf.mxu0
  %v2365 = vadd.f32 %v1992, %v2364
  %v2366 = vpop.f32.mrf.mxu0
  %v2367 = vpop.f32.mrf.mxu0
  %v2368 = vadd.f32 %v1993, %v2367
  %v2369 = vpop.f32.mrf.mxu0
  %2370 = vmatprep.mubr.bf16.mxu0 0
  %2371 = vmatmul.mubr.bf16.gmra.mxu0 %v2320
  %v2372 = vpop.f32.mrf.mxu0
  %v2373 = vadd.f32 %v1994, %v2372
  %v2374 = vpop.f32.mrf.mxu0
  %v2375 = vpop.f32.mrf.mxu0
  %v2376 = vadd.f32 %v1995, %v2375
  %v2377 = vpop.f32.mrf.mxu0
  %2378 = vmatprep.mubr.bf16.mxu0 0
  %2379 = vmatmul.mubr.bf16.gmra.mxu0 %v2321
  %v2380 = vpop.f32.mrf.mxu0
  %v2381 = vadd.f32 %v1996, %v2380
  %v2382 = vpop.f32.mrf.mxu0
  %v2383 = vpop.f32.mrf.mxu0
  %v2384 = vadd.f32 %v1997, %v2383
  %v2385 = vpop.f32.mrf.mxu0
  %2386 = vdwg.mxu0
  %s2387 = scalar_lea.vmem %s6, 192
  %2388 = vst.msk [vmem:[%s2387] sm:$0xff] %vm1160, %v2357
  %2389 = vst.msk [vmem:[%s2387 + $0x8] sm:$0xff] %vm1160, %v2360
  %2390 = vst.msk [vmem:[%s2387 + $0x10] sm:$0xff] %vm1160, %v2365
  %2391 = vst.msk [vmem:[%s2387 + $0x18] sm:$0xff] %vm1160, %v2368
  %2392 = vst.msk [vmem:[%s2387 + $0x20] sm:$0xff] %vm1160, %v2373
  %2393 = vst.msk [vmem:[%s2387 + $0x28] sm:$0xff] %vm1160, %v2376
  %2394 = vst.msk [vmem:[%s2387 + $0x30] sm:$0xff] %vm1160, %v2381
  %2395 = vst.msk [vmem:[%s2387 + $0x38] sm:$0xff] %vm1160, %v2384
  // Predicated region
  $region26: #{tpu_custom_call.1} parent=0 // pred_check
    _
  $region27: #{tpu_custom_call.1} parent=0 // pred_check_branch
    %2397 = sbr.rel (0) target = $region29
  $region28: #{tpu_custom_call.1} parent=0 // pred_region
    _
  $region29: #{tpu_custom_call.1} parent=0 // pred_fallthru
    _
  // Predicated region
  $region30: #{tpu_custom_call.1} parent=0 // pred_check
    _
  $region31: #{tpu_custom_call.1} parent=0 // pred_check_branch
    %2399 = sbr.rel (0) target = $region33
  $region32: #{tpu_custom_call.1} parent=0 // pred_region
    _
  $region33: #{tpu_custom_call.1} parent=0 // pred_fallthru
    _

</llo_original>
